<compile_context>
chip_gen: v7x
topology: tpu7x:2x2x1
jax: 0.10.0
libtpu: 0.0.40
codegen_flags: <defaults>
</compile_context>

<pallas_src>
import functools

import jax
import jax.numpy as jnp
from jax.experimental import pallas as pl
from jax.experimental.pallas import tpu as pltpu


def _round_up(x, m):
    return (x + m - 1) // m * m


def decoder_kernel(embd_ref, enc_ref, h0_ref, c0_ref,
                   w_gates_ref, b_gates_ref, w_att_ref, b_att_ref,
                   w3_ref, b3_ref,
                   pred_ref, h_ref, c_ref,
                   att_sc, m_sc, l_sc, *, embd_p, hidden_p, tile_v):
    """Grid axis 0 streams contiguous vocab tiles of the output projection.

    LSTM + attention run once (j == 0) and persist in VMEM scratch / outputs; every grid
    step does one (Bp, Hp) x (Hp, tile_v) bf16 MXU matmul (fp32 accumulate) and updates
    online log-softmax stats; the last step finalizes the resident (Bp, Vp) logits.
    """
    j = pl.program_id(0)
    Ep, Hp = embd_p, hidden_p
    f32 = jnp.float32
    bf16 = jnp.bfloat16

    # ---- step 0: LSTM cell + attention (results persist across the vocab stream) ----
    @pl.when(j == 0)
    def _():
        h0 = h0_ref[...]
        c0 = c0_ref[...]
        # Fused LSTM gates: two bf16 MXU matmuls against row-slices of the fused weight
        # (no in-kernel concatenate), fp32 accumulate; PyTorch gate order (i, f, g, o).
        gates = (jnp.dot(embd_ref[...].astype(bf16), w_gates_ref[:Ep, :],
                         preferred_element_type=f32)
                 + jnp.dot(h0.astype(bf16), w_gates_ref[Ep:, :],
                           preferred_element_type=f32)
                 + b_gates_ref[...])                                      # (Bp, 4Hp) f32
        i_g = jax.nn.sigmoid(gates[:, 0 * Hp:1 * Hp])
        f_g = jax.nn.sigmoid(gates[:, 1 * Hp:2 * Hp])
        g_g = jnp.tanh(gates[:, 2 * Hp:3 * Hp])
        o_g = jax.nn.sigmoid(gates[:, 3 * Hp:4 * Hp])
        c_new = f_g * c0 + i_g * g_g
        h_new = o_g * jnp.tanh(c_new)
        h_ref[...] = h_new
        c_ref[...] = c_new

        # Attention over the (short) encoder sequence on the VPU: with M=1 per batch
        # row, a batched MXU dot would push Bp nearly-empty tiles through the MXU FIFO.
        enc = enc_ref[...]                                                # (Bp, S, Hp)
        align = jnp.sum(enc * h_new[:, None, :], axis=-1)                 # (Bp, S)
        align = align - jnp.max(align, axis=-1, keepdims=True)
        expw = jnp.exp(align)
        inv = pl.reciprocal(jnp.sum(expw, axis=-1, keepdims=True), approx=False)
        wts = expw * inv                                                  # softmax over S
        ctx = jnp.sum(wts[:, :, None] * enc, axis=1)                      # (Bp, Hp)

        # ll1(h) + ll2(ctx) fused: row-sliced bf16 matmuls, fp32 accumulate + bias.
        att = jnp.tanh(
            jnp.dot(h_new.astype(bf16), w_att_ref[:Hp, :], preferred_element_type=f32)
            + jnp.dot(ctx.astype(bf16), w_att_ref[Hp:, :], preferred_element_type=f32)
            + b_att_ref[...])                                             # (Bp, Hp) f32
        att_sc[...] = att.astype(bf16)   # bf16: exactly what the vocab matmul consumes

        m_sc[...] = jnp.full(m_sc.shape, -jnp.inf, f32)
        l_sc[...] = jnp.zeros(l_sc.shape, f32)

    # ---- every step: one contiguous vocab tile of the output projection ----
    logits = (jnp.dot(att_sc[...], w3_ref[0], preferred_element_type=f32)
              + b3_ref[0])                                                # (Bp, tile_v)
    col = pl.multiple_of(j * tile_v, tile_v)
    pred_ref[:, pl.ds(col, tile_v)] = logits

    # Online log-softmax statistics (running max / rescaled running sum).
    m_prev = m_sc[...]
    m_new = jnp.maximum(m_prev, jnp.max(logits, axis=-1, keepdims=True))
    l_sc[...] = (l_sc[...] * jnp.exp(m_prev - m_new)
                 + jnp.sum(jnp.exp(logits - m_new), axis=-1, keepdims=True))
    m_sc[...] = m_new

    # ---- last step: finalize log-softmax over the resident (Bp, Vp) block ----
    @pl.when(j == pl.num_programs(0) - 1)
    def _():
        pred_ref[...] = pred_ref[...] - (m_sc[...] + jnp.log(l_sc[...]))


def pack_decoder_params(params, *, tile_v=4096):
    """One-time repack of PyTorch-convention weights into the kernel layout.

    Pre-transposes every weight to (in, out), fuses [w_ih; w_hh] (+ folded bias) and
    [ll1_w; ll2_w], pads E/H to 128 lanes and V to a multiple of the vocab tile, casts
    the matmul weights to bfloat16 (biases stay fp32), and lays the vocab projection out
    tile-major (n_tiles, Hp, tile_v) so each streamed tile is one contiguous HBM region.
    Padded vocab columns get a -1e30 fp32 bias so they never influence the log-softmax.
    Sizing note: the streamed bf16 weight tile is double-buffered, so keep
    2 * tile_v * Hp * 2 bytes (plus residents) well inside the vmem limit.
    """
    emb = params['embedding']                                   # (V, E)
    w_ih, w_hh = params['w_ih'], params['w_hh']                 # (4H, E), (4H, H)
    b_gates_raw = (params['b_ih'] + params['b_hh']).reshape(-1)  # (4H,)
    ll1_w, ll2_w, ll3_w = params['ll1_w'], params['ll2_w'], params['ll3_w']
    ll1_b = params['ll1_b'].reshape(-1)
    ll2_b = params['ll2_b'].reshape(-1)
    ll3_b = params['ll3_b'].reshape(-1)

    V, E = emb.shape
    H = ll1_w.shape[0]
    Ep = _round_up(E, 128)
    Hp = _round_up(H, 128)
    tile_v = max(128, min(_round_up(tile_v, 128), _round_up(V, 128)))
    Vp = _round_up(V, tile_v)
    n_tiles = Vp // tile_v
    f32, bf16 = jnp.float32, jnp.bfloat16

    # Fused, transposed LSTM gate weight (Ep+Hp, 4*Hp) with per-gate lane padding.
    w_ih_g = jnp.pad(w_ih.reshape(4, H, E), ((0, 0), (0, Hp - H), (0, Ep - E)))
    w_hh_g = jnp.pad(w_hh.reshape(4, H, H), ((0, 0), (0, Hp - H), (0, Hp - H)))
    w_gates = jnp.concatenate(
        [jnp.transpose(w_ih_g, (2, 0, 1)).reshape(Ep, 4 * Hp),
         jnp.transpose(w_hh_g, (2, 0, 1)).reshape(Hp, 4 * Hp)], axis=0).astype(bf16)
    b_gates = jnp.pad(b_gates_raw.reshape(4, H),
                      ((0, 0), (0, Hp - H))).reshape(1, 4 * Hp).astype(f32)

    # Fused, transposed attention projection: [ll1_w.T ; ll2_w.T] -> (2*Hp, Hp).
    w_att = jnp.concatenate(
        [jnp.pad(ll1_w.T, ((0, Hp - H), (0, Hp - H))),
         jnp.pad(ll2_w.T, ((0, Hp - H), (0, Hp - H)))], axis=0).astype(bf16)
    b_att = jnp.pad(ll1_b + ll2_b, (0, Hp - H)).reshape(1, Hp).astype(f32)

    # Output projection: transposed, padded, tile-major; padded vocab columns masked
    # via the fp32 bias (the -1e30 mask must NOT live in the quantized weight).
    w3_full = jnp.pad(ll3_w.T, ((0, Hp - H), (0, Vp - V)))                  # (Hp, Vp)
    w3 = jnp.transpose(w3_full.reshape(Hp, n_tiles, tile_v),
                       (1, 0, 2)).astype(bf16)                              # (n_tiles, Hp, tile_v)
    b3 = jnp.pad(ll3_b, (0, Vp - V), constant_values=-1e30)
    b3 = b3.reshape(n_tiles, 1, tile_v).astype(f32)

    return {
        'embedding': jnp.pad(emb, ((0, 0), (0, Ep - E))).astype(f32),       # (V, Ep)
        'w_gates': w_gates, 'b_gates': b_gates,
        'w_att': w_att, 'b_att': b_att,
        'w3': w3, 'b3': b3,
        'dims': dict(V=V, E=E, H=H, Vp=Vp, Ep=Ep, Hp=Hp, tile_v=tile_v, n_tiles=n_tiles),
    }


def _vmem_limit_bytes():
    """Explicit scoped-VMEM limit: ~100 MiB on 128 MiB parts, ~54 MiB on v7x (64 MiB)."""
    try:
        cap = int(getattr(pltpu.get_tpu_info(), 'vmem_capacity_bytes', 0))
    except Exception:
        cap = 0
    if cap <= 0:
        cap = 64 * 1024 * 1024   # conservative fallback (v7x physical per-core VMEM)
    return min(100 * 1024 * 1024, int(cap * 0.85))


def decoder_forward(x, encoder_states, hidden_state, cell_state, packed):
    """x: (1, B) int32; encoder_states: (S, B, H); hidden/cell: (1, B, H)."""
    d = packed['dims']
    V, H = d['V'], d['H']
    Vp, Ep, Hp, tile_v, n_tiles = d['Vp'], d['Ep'], d['Hp'], d['tile_v'], d['n_tiles']
    B = x.shape[1]
    S = encoder_states.shape[0]
    Bp = _round_up(B, 16)   # 16 sublanes: safe for the bf16 activations fed to the MXU

    # Glue: embedding gather + batch-major encoder layout + alignment padding.
    # TODO(synk): in a real decode loop, have the encoder emit (B, S, H) directly so
    # this per-step transpose disappears, and keep weights resident across timesteps.
    embd = jnp.pad(jnp.take(packed['embedding'], x[0], axis=0), ((0, Bp - B), (0, 0)))
    enc = jnp.pad(jnp.transpose(encoder_states, (1, 0, 2)),
                  ((0, Bp - B), (0, 0), (0, Hp - H)))
    h0 = jnp.pad(hidden_state[0], ((0, Bp - B), (0, Hp - H)))
    c0 = jnp.pad(cell_state[0], ((0, Bp - B), (0, Hp - H)))

    kernel = functools.partial(decoder_kernel, embd_p=Ep, hidden_p=Hp, tile_v=tile_v)

    grid_spec = pltpu.PrefetchScalarGridSpec(
        num_scalar_prefetch=0,
        grid=(n_tiles,),
        in_specs=[
            pl.BlockSpec((Bp, Ep), lambda j: (0, 0)),             # embd (resident)
            pl.BlockSpec((Bp, S, Hp), lambda j: (0, 0, 0)),       # enc  (resident)
            pl.BlockSpec((Bp, Hp), lambda j: (0, 0)),             # h0
            pl.BlockSpec((Bp, Hp), lambda j: (0, 0)),             # c0
            pl.BlockSpec((Ep + Hp, 4 * Hp), lambda j: (0, 0)),    # fused LSTM weight (bf16)
            pl.BlockSpec((1, 4 * Hp), lambda j: (0, 0)),          # fused LSTM bias (f32)
            pl.BlockSpec((2 * Hp, Hp), lambda j: (0, 0)),         # fused ll1/ll2 weight (bf16)
            pl.BlockSpec((1, Hp), lambda j: (0, 0)),              # fused ll1/ll2 bias (f32)
            pl.BlockSpec((1, Hp, tile_v), lambda j: (j, 0, 0)),   # ll3 weight, tile-major stream
            pl.BlockSpec((1, 1, tile_v), lambda j: (j, 0, 0)),    # ll3 bias,   tile-major stream
        ],
        out_specs=(
            pl.BlockSpec((Bp, Vp), lambda j: (0, 0)),             # pred (VMEM resident)
            pl.BlockSpec((Bp, Hp), lambda j: (0, 0)),             # h_new
            pl.BlockSpec((Bp, Hp), lambda j: (0, 0)),             # c_new
        ),
        scratch_shapes=[
            pltpu.VMEM((Bp, Hp), jnp.bfloat16),   # attention output (matmul-ready)
            pltpu.VMEM((Bp, 1), jnp.float32),     # running max
            pltpu.VMEM((Bp, 1), jnp.float32),     # running sum
        ],
    )

    pred_p, h_p, c_p = pl.pallas_call(
        kernel,
        out_shape=(jax.ShapeDtypeStruct((Bp, Vp), jnp.float32),
                   jax.ShapeDtypeStruct((Bp, Hp), jnp.float32),
                   jax.ShapeDtypeStruct((Bp, Hp), jnp.float32)),
        grid_spec=grid_spec,
        compiler_params=pltpu.CompilerParams(
            dimension_semantics=("arbitrary",),     # vocab axis carries online stats
            vmem_limit_bytes=_vmem_limit_bytes()),
    )(embd, enc, h0, c0,
      packed['w_gates'], packed['b_gates'],
      packed['w_att'], packed['b_att'],
      packed['w3'], packed['b3'])

    pred = pred_p[:B, :V]
    # PyTorch returns hidden/cell with leading num_layers dim.
    return pred, h_p[:B, :H][None], c_p[:B, :H][None]


def decoder_ref(x, encoder_states, hidden_state, cell_state, params, hidden_sz):
    """Pure-JAX fp32 reference mirroring the PyTorch forward (for correctness check)."""
    H = hidden_sz
    embd = jnp.take(params['embedding'], x[0], axis=0)
    h0, c0 = hidden_state[0], cell_state[0]
    gates = (embd @ params['w_ih'].T + h0 @ params['w_hh'].T
             + params['b_ih'] + params['b_hh'])
    i_g = jax.nn.sigmoid(gates[:, :H])
    f_g = jax.nn.sigmoid(gates[:, H:2 * H])
    g_g = jnp.tanh(gates[:, 2 * H:3 * H])
    o_g = jax.nn.sigmoid(gates[:, 3 * H:])
    c_new = f_g * c0 + i_g * g_g
    h_new = o_g * jnp.tanh(c_new)
    enc = jnp.transpose(encoder_states, (1, 0, 2))
    alignment = jnp.einsum('bsh,bh->bs', enc, h_new)
    weights = jax.nn.softmax(alignment, axis=-1)
    context = jnp.einsum('bsh,bs->bh', enc, weights)
    att = jnp.tanh(h_new @ params['ll1_w'].T + params['ll1_b']
                   + context @ params['ll2_w'].T + params['ll2_b'])
    logits = att @ params['ll3_w'].T + params['ll3_b']
    pred = jax.nn.log_softmax(logits, axis=-1)
    return pred, h_new[None], c_new[None]


def init_params(key, vocab_sz, embd_sz, hidden_sz, pad_index):
    ks = jax.random.split(key, 11)
    s = 0.1
    emb = s * jax.random.normal(ks[0], (vocab_sz, embd_sz), jnp.float32)
    emb = emb.at[pad_index].set(0.0)                            # padding_idx row is zero
    return {
        'embedding': emb,
        'w_ih': s * jax.random.normal(ks[1], (4 * hidden_sz, embd_sz), jnp.float32),
        'w_hh': s * jax.random.normal(ks[2], (4 * hidden_sz, hidden_sz), jnp.float32),
        'b_ih': s * jax.random.normal(ks[3], (1, 4 * hidden_sz), jnp.float32),
        'b_hh': s * jax.random.normal(ks[4], (1, 4 * hidden_sz), jnp.float32),
        'll1_w': s * jax.random.normal(ks[5], (hidden_sz, hidden_sz), jnp.float32),
        'll1_b': s * jax.random.normal(ks[6], (1, hidden_sz), jnp.float32),
        'll2_w': s * jax.random.normal(ks[7], (hidden_sz, hidden_sz), jnp.float32),
        'll2_b': s * jax.random.normal(ks[8], (1, hidden_sz), jnp.float32),
        'll3_w': s * jax.random.normal(ks[9], (vocab_sz, hidden_sz), jnp.float32),
        'll3_b': s * jax.random.normal(ks[10], (1, vocab_sz), jnp.float32),
    }


if __name__ == "__main__":
    vocab_sz, embd_sz, hidden_sz = 64, 16, 32
    seq_len, batch_sz, pad_index = 8, 4, 0

    key = jax.random.PRNGKey(0)
    k_p, k_x, k_e, k_h, k_c = jax.random.split(key, 5)
    params = init_params(k_p, vocab_sz, embd_sz, hidden_sz, pad_index)
    packed = pack_decoder_params(params)      # one-time weight repack (not per-step)

    x = jax.random.randint(k_x, (1, batch_sz), 1, vocab_sz, dtype=jnp.int32)
    encoder_states = jax.random.normal(k_e, (seq_len, batch_sz, hidden_sz), jnp.float32)
    hidden_state = jax.random.normal(k_h, (1, batch_sz, hidden_sz), jnp.float32)
    cell_state = jax.random.normal(k_c, (1, batch_sz, hidden_sz), jnp.float32)

    pred, h_new, c_new = decoder_forward(x, encoder_states, hidden_state, cell_state,
                                         packed)
    jax.block_until_ready((pred, h_new, c_new))

    pred_r, h_r, c_r = decoder_ref(x, encoder_states, hidden_state, cell_state,
                                   params, hidden_sz)
    assert pred.shape == (batch_sz, vocab_sz)
    assert h_new.shape == (1, batch_sz, hidden_sz)
    assert c_new.shape == (1, batch_sz, hidden_sz)
    # Tolerances loosened from the fp32 1e-5 check because the matmul weights are now
    # bfloat16 (per the performance review); accumulation is still fp32.
    assert jnp.allclose(h_new, h_r, atol=2e-2, rtol=2e-2)
    assert jnp.allclose(c_new, c_r, atol=2e-2, rtol=2e-2)
    assert jnp.allclose(pred, pred_r, atol=5e-2, rtol=2e-2)
    assert bool(jnp.all(jnp.isfinite(pred)))

    print("KERNEL_OK")
</pallas_src>

<mosaic_0001>
module attributes {stable_mosaic.version = 11 : i64} {
  func.func @decoder_kernel(%arg0: i32, %arg1: memref<16x128xf32, #tpu.memory_space<vmem>>, %arg2: memref<16x8x128xf32, #tpu.memory_space<vmem>>, %arg3: memref<16x128xf32, #tpu.memory_space<vmem>>, %arg4: memref<16x128xf32, #tpu.memory_space<vmem>>, %arg5: memref<256x512xbf16, #tpu.memory_space<vmem>>, %arg6: memref<1x512xf32, #tpu.memory_space<vmem>>, %arg7: memref<256x128xbf16, #tpu.memory_space<vmem>>, %arg8: memref<1x128xf32, #tpu.memory_space<vmem>>, %arg9: memref<1x128x128xbf16, #tpu.memory_space<vmem>>, %arg10: memref<1x1x128xf32, #tpu.memory_space<vmem>>, %arg11: memref<16x128xf32, #tpu.memory_space<vmem>>, %arg12: memref<16x128xf32, #tpu.memory_space<vmem>>, %arg13: memref<16x128xf32, #tpu.memory_space<vmem>>, %arg14: memref<16x128xbf16, #tpu.memory_space<vmem>>, %arg15: memref<16x1xf32, #tpu.memory_space<vmem>>, %arg16: memref<16x1xf32, #tpu.memory_space<vmem>>) attributes {dimension_semantics = [#tpu.dimension_semantics<arbitrary>], iteration_bounds = array<i64: 1>, scalar_prefetch = 0 : i64, scratch_operands = 3 : i64, tpu.core_type = #tpu.core_type<tc>, window_params = [{pipeline_mode = #tpu.pipeline_mode<synchronous>, transform_indices = @transform_0, window_bounds = array<i64: 16, 128>}, {pipeline_mode = #tpu.pipeline_mode<synchronous>, transform_indices = @transform_1, window_bounds = array<i64: 16, 8, 128>}, {pipeline_mode = #tpu.pipeline_mode<synchronous>, transform_indices = @transform_2, window_bounds = array<i64: 16, 128>}, {pipeline_mode = #tpu.pipeline_mode<synchronous>, transform_indices = @transform_3, window_bounds = array<i64: 16, 128>}, {pipeline_mode = #tpu.pipeline_mode<synchronous>, transform_indices = @transform_4, window_bounds = array<i64: 256, 512>}, {pipeline_mode = #tpu.pipeline_mode<synchronous>, transform_indices = @transform_5, window_bounds = array<i64: 1, 512>}, {pipeline_mode = #tpu.pipeline_mode<synchronous>, transform_indices = @transform_6, window_bounds = array<i64: 256, 128>}, {pipeline_mode = #tpu.pipeline_mode<synchronous>, transform_indices = @transform_7, window_bounds = array<i64: 1, 128>}, {transform_indices = @transform_8, window_bounds = array<i64: 1, 128, 128>}, {transform_indices = @transform_9, window_bounds = array<i64: 1, 1, 128>}, {pipeline_mode = #tpu.pipeline_mode<synchronous>, transform_indices = @transform_10, window_bounds = array<i64: 16, 128>}, {pipeline_mode = #tpu.pipeline_mode<synchronous>, transform_indices = @transform_11, window_bounds = array<i64: 16, 128>}, {pipeline_mode = #tpu.pipeline_mode<synchronous>, transform_indices = @transform_12, window_bounds = array<i64: 16, 128>}]} {
    %c0_i32 = arith.constant 0 : i32
    %0 = arith.cmpi eq, %arg0, %c0_i32 : i32
    %1 = arith.extui %0 : i1 to i32
    %c0_i32_0 = arith.constant 0 : i32
    %2 = arith.cmpi ne, %1, %c0_i32_0 : i32
    scf.if %2 {
      %c0_21 = arith.constant 0 : index
      %c0_22 = arith.constant 0 : index
      %34 = vector.load %arg3[%c0_21, %c0_22] : memref<16x128xf32, #tpu.memory_space<vmem>>, vector<16x128xf32>
      %c0_23 = arith.constant 0 : index
      %c0_24 = arith.constant 0 : index
      %35 = vector.load %arg4[%c0_23, %c0_24] : memref<16x128xf32, #tpu.memory_space<vmem>>, vector<16x128xf32>
      %c0_25 = arith.constant 0 : index
      %c0_26 = arith.constant 0 : index
      %36 = vector.load %arg1[%c0_25, %c0_26] : memref<16x128xf32, #tpu.memory_space<vmem>>, vector<16x128xf32>
      %37 = arith.truncf %36 : vector<16x128xf32> to vector<16x128xbf16>
      %c0_27 = arith.constant 0 : index
      %c0_28 = arith.constant 0 : index
      %38 = vector.load %arg5[%c0_27, %c0_28] : memref<256x512xbf16, #tpu.memory_space<vmem>>, vector<128x512xbf16>
      %cst_29 = arith.constant dense<0.000000e+00> : vector<16x512xf32>
      %39 = tpu.matmul %37, %38, %cst_29 {dimension_numbers = #tpu.dot_dimension_numbers<[1], [0], [0], [1], [0, 0, 1, 1], [], []>} : vector<16x128xbf16>, vector<128x512xbf16>, vector<16x512xf32> -> vector<16x512xf32>
      %40 = arith.truncf %34 : vector<16x128xf32> to vector<16x128xbf16>
      %c128 = arith.constant 128 : index
      %c0_30 = arith.constant 0 : index
      %41 = vector.load %arg5[%c128, %c0_30] : memref<256x512xbf16, #tpu.memory_space<vmem>>, vector<128x512xbf16>
      %cst_31 = arith.constant dense<0.000000e+00> : vector<16x512xf32>
      %42 = tpu.matmul %40, %41, %cst_31 {dimension_numbers = #tpu.dot_dimension_numbers<[1], [0], [0], [1], [0, 0, 1, 1], [], []>} : vector<16x128xbf16>, vector<128x512xbf16>, vector<16x512xf32> -> vector<16x512xf32>
      %43 = arith.addf %39, %42 : vector<16x512xf32>
      %c0_32 = arith.constant 0 : index
      %c0_33 = arith.constant 0 : index
      %44 = vector.load %arg6[%c0_32, %c0_33] : memref<1x512xf32, #tpu.memory_space<vmem>>, vector<1x512xf32>
      %45 = vector.broadcast %44 : vector<1x512xf32> to vector<16x512xf32>
      %46 = arith.addf %43, %45 : vector<16x512xf32>
      %47 = vector.extract_strided_slice %46 {offsets = [0, 0], sizes = [16, 128], strides = [1, 1]} : vector<16x512xf32> to vector<16x128xf32>
      %48 = arith.negf %47 : vector<16x128xf32>
      %49 = math.exp %48 : vector<16x128xf32>
      %cst_34 = arith.constant 1.000000e+00 : f32
      %50 = vector.broadcast %cst_34 : f32 to vector<16x128xf32>
      %51 = arith.addf %50, %49 : vector<16x128xf32>
      %52 = arith.divf %50, %51 : vector<16x128xf32>
      %53 = vector.extract_strided_slice %46 {offsets = [0, 128], sizes = [16, 128], strides = [1, 1]} : vector<16x512xf32> to vector<16x128xf32>
      %54 = arith.negf %53 : vector<16x128xf32>
      %55 = math.exp %54 : vector<16x128xf32>
      %cst_35 = arith.constant 1.000000e+00 : f32
      %56 = vector.broadcast %cst_35 : f32 to vector<16x128xf32>
      %57 = arith.addf %56, %55 : vector<16x128xf32>
      %58 = arith.divf %56, %57 : vector<16x128xf32>
      %59 = vector.extract_strided_slice %46 {offsets = [0, 256], sizes = [16, 128], strides = [1, 1]} : vector<16x512xf32> to vector<16x128xf32>
      %60 = math.tanh %59 : vector<16x128xf32>
      %61 = vector.extract_strided_slice %46 {offsets = [0, 384], sizes = [16, 128], strides = [1, 1]} : vector<16x512xf32> to vector<16x128xf32>
      %62 = arith.negf %61 : vector<16x128xf32>
      %63 = math.exp %62 : vector<16x128xf32>
      %cst_36 = arith.constant 1.000000e+00 : f32
      %64 = vector.broadcast %cst_36 : f32 to vector<16x128xf32>
      %65 = arith.addf %64, %63 : vector<16x128xf32>
      %66 = arith.divf %64, %65 : vector<16x128xf32>
      %67 = arith.mulf %58, %35 : vector<16x128xf32>
      %68 = arith.mulf %52, %60 : vector<16x128xf32>
      %69 = arith.addf %67, %68 : vector<16x128xf32>
      %70 = math.tanh %69 : vector<16x128xf32>
      %71 = arith.mulf %66, %70 : vector<16x128xf32>
      %c0_37 = arith.constant 0 : index
      %c0_38 = arith.constant 0 : index
      %72 = vector.load %arg12[%c0_37, %c0_38] : memref<16x128xf32, #tpu.memory_space<vmem>>, vector<16x128xf32>
      tpu.vector_store %arg12[%c0_37, %c0_38], %71 {strides = array<i32>} : memref<16x128xf32, #tpu.memory_space<vmem>>, vector<16x128xf32>,
      %c0_39 = arith.constant 0 : index
      %c0_40 = arith.constant 0 : index
      %73 = vector.load %arg13[%c0_39, %c0_40] : memref<16x128xf32, #tpu.memory_space<vmem>>, vector<16x128xf32>
      tpu.vector_store %arg13[%c0_39, %c0_40], %69 {strides = array<i32>} : memref<16x128xf32, #tpu.memory_space<vmem>>, vector<16x128xf32>,
      %c0_41 = arith.constant 0 : index
      %c0_42 = arith.constant 0 : index
      %c0_43 = arith.constant 0 : index
      %74 = vector.load %arg2[%c0_41, %c0_42, %c0_43] : memref<16x8x128xf32, #tpu.memory_space<vmem>>, vector<16x8x128xf32>
      %75 = vector.shape_cast %71 : vector<16x128xf32> to vector<16x1x128xf32>
      %76 = vector.broadcast %75 : vector<16x1x128xf32> to vector<16x8x128xf32>
      %77 = arith.mulf %74, %76 : vector<16x8x128xf32>
      %cst_44 = arith.constant dense<0.000000e+00> : vector<16x8xf32>
      %78 = vector.multi_reduction <add>, %77, %cst_44 [2] : vector<16x8x128xf32> to vector<16x8xf32>
      %cst_45 = arith.constant dense<0xFF800000> : vector<16xf32>
      %79 = vector.multi_reduction <maximumf>, %78, %cst_45 [1] : vector<16x8xf32> to vector<16xf32>
      %80 = vector.shape_cast %79 : vector<16xf32> to vector<16x1xf32>
      %81 = vector.broadcast %80 : vector<16x1xf32> to vector<16x8xf32>
      %82 = arith.subf %78, %81 : vector<16x8xf32>
      %83 = math.exp %82 : vector<16x8xf32>
      %cst_46 = arith.constant dense<0.000000e+00> : vector<16xf32>
      %84 = vector.multi_reduction <add>, %83, %cst_46 [1] : vector<16x8xf32> to vector<16xf32>
      %85 = vector.shape_cast %84 : vector<16xf32> to vector<16x1xf32>
      %86 = tpu.reciprocal %85 : vector<16x1xf32> -> vector<16x1xf32>
      %87 = vector.broadcast %86 : vector<16x1xf32> to vector<16x8xf32>
      %88 = arith.mulf %83, %87 : vector<16x8xf32>
      %89 = vector.shape_cast %88 : vector<16x8xf32> to vector<16x8x1xf32>
      %90 = vector.broadcast %89 : vector<16x8x1xf32> to vector<16x8x128xf32>
      %91 = arith.mulf %90, %74 : vector<16x8x128xf32>
      %cst_47 = arith.constant dense<0.000000e+00> : vector<16x128xf32>
      %92 = vector.multi_reduction <add>, %91, %cst_47 [1] : vector<16x8x128xf32> to vector<16x128xf32>
      %93 = arith.truncf %71 : vector<16x128xf32> to vector<16x128xbf16>
      %c0_48 = arith.constant 0 : index
      %c0_49 = arith.constant 0 : index
      %94 = vector.load %arg7[%c0_48, %c0_49] : memref<256x128xbf16, #tpu.memory_space<vmem>>, vector<128x128xbf16>
      %cst_50 = arith.constant dense<0.000000e+00> : vector<16x128xf32>
      %95 = tpu.matmul %93, %94, %cst_50 {dimension_numbers = #tpu.dot_dimension_numbers<[1], [0], [0], [1], [0, 0, 1, 1], [], []>} : vector<16x128xbf16>, vector<128x128xbf16>, vector<16x128xf32> -> vector<16x128xf32>
      %96 = arith.truncf %92 : vector<16x128xf32> to vector<16x128xbf16>
      %c128_51 = arith.constant 128 : index
      %c0_52 = arith.constant 0 : index
      %97 = vector.load %arg7[%c128_51, %c0_52] : memref<256x128xbf16, #tpu.memory_space<vmem>>, vector<128x128xbf16>
      %cst_53 = arith.constant dense<0.000000e+00> : vector<16x128xf32>
      %98 = tpu.matmul %96, %97, %cst_53 {dimension_numbers = #tpu.dot_dimension_numbers<[1], [0], [0], [1], [0, 0, 1, 1], [], []>} : vector<16x128xbf16>, vector<128x128xbf16>, vector<16x128xf32> -> vector<16x128xf32>
      %99 = arith.addf %95, %98 : vector<16x128xf32>
      %c0_54 = arith.constant 0 : index
      %c0_55 = arith.constant 0 : index
      %100 = vector.load %arg8[%c0_54, %c0_55] : memref<1x128xf32, #tpu.memory_space<vmem>>, vector<1x128xf32>
      %101 = vector.broadcast %100 : vector<1x128xf32> to vector<16x128xf32>
      %102 = arith.addf %99, %101 : vector<16x128xf32>
      %103 = math.tanh %102 : vector<16x128xf32>
      %104 = arith.truncf %103 : vector<16x128xf32> to vector<16x128xbf16>
      %c0_56 = arith.constant 0 : index
      %c0_57 = arith.constant 0 : index
      %105 = vector.load %arg14[%c0_56, %c0_57] : memref<16x128xbf16, #tpu.memory_space<vmem>>, vector<16x128xbf16>
      tpu.vector_store %arg14[%c0_56, %c0_57], %104 {strides = array<i32>} : memref<16x128xbf16, #tpu.memory_space<vmem>>, vector<16x128xbf16>,
      %cst_58 = arith.constant 0xFF800000 : f32
      %106 = vector.broadcast %cst_58 : f32 to vector<16x1xf32>
      %c0_59 = arith.constant 0 : index
      %c0_60 = arith.constant 0 : index
      %107 = vector.load %arg15[%c0_59, %c0_60] : memref<16x1xf32, #tpu.memory_space<vmem>>, vector<16x1xf32>
      tpu.vector_store %arg15[%c0_59, %c0_60], %106 {strides = array<i32>} : memref<16x1xf32, #tpu.memory_space<vmem>>, vector<16x1xf32>,
      %cst_61 = arith.constant 0.000000e+00 : f32
      %108 = vector.broadcast %cst_61 : f32 to vector<16x1xf32>
      %c0_62 = arith.constant 0 : index
      %c0_63 = arith.constant 0 : index
      %109 = vector.load %arg16[%c0_62, %c0_63] : memref<16x1xf32, #tpu.memory_space<vmem>>, vector<16x1xf32>
      tpu.vector_store %arg16[%c0_62, %c0_63], %108 {strides = array<i32>} : memref<16x1xf32, #tpu.memory_space<vmem>>, vector<16x1xf32>,
    } else {
    }
    %c0 = arith.constant 0 : index
    %c0_1 = arith.constant 0 : index
    %3 = vector.load %arg14[%c0, %c0_1] : memref<16x128xbf16, #tpu.memory_space<vmem>>, vector<16x128xbf16>
    %c0_2 = arith.constant 0 : index
    %c0_3 = arith.constant 0 : index
    %c0_4 = arith.constant 0 : index
    %4 = vector.load %arg9[%c0_2, %c0_3, %c0_4] : memref<1x128x128xbf16, #tpu.memory_space<vmem>>, vector<1x128x128xbf16>
    %5 = vector.shape_cast %4 : vector<1x128x128xbf16> to vector<128x128xbf16>
    %cst = arith.constant dense<0.000000e+00> : vector<16x128xf32>
    %6 = tpu.matmul %3, %5, %cst {dimension_numbers = #tpu.dot_dimension_numbers<[1], [0], [0], [1], [0, 0, 1, 1], [], []>} : vector<16x128xbf16>, vector<128x128xbf16>, vector<16x128xf32> -> vector<16x128xf32>
    %c0_5 = arith.constant 0 : index
    %c0_6 = arith.constant 0 : index
    %c0_7 = arith.constant 0 : index
    %7 = vector.load %arg10[%c0_5, %c0_6, %c0_7] : memref<1x1x128xf32, #tpu.memory_space<vmem>>, vector<1x1x128xf32>
    %8 = vector.shape_cast %7 : vector<1x1x128xf32> to vector<1x128xf32>
    %9 = vector.broadcast %8 : vector<1x128xf32> to vector<16x128xf32>
    %10 = arith.addf %6, %9 : vector<16x128xf32>
    %c128_i32 = arith.constant 128 : i32
    %11 = arith.muli %arg0, %c128_i32 : i32
    %12 = tpu.assume_multiple %11, 128 : i32
    %c0_8 = arith.constant 0 : index
    %13 = arith.index_cast %12 : i32 to index
    %14 = vector.load %arg11[%c0_8, %13] : memref<16x128xf32, #tpu.memory_space<vmem>>, vector<16x128xf32>
    tpu.vector_store %arg11[%c0_8, %13], %10 {strides = array<i32>} : memref<16x128xf32, #tpu.memory_space<vmem>>, vector<16x128xf32>,
    %c0_9 = arith.constant 0 : index
    %c0_10 = arith.constant 0 : index
    %15 = vector.load %arg15[%c0_9, %c0_10] : memref<16x1xf32, #tpu.memory_space<vmem>>, vector<16x1xf32>
    %cst_11 = arith.constant dense<0xFF800000> : vector<16xf32>
    %16 = vector.multi_reduction <maximumf>, %10, %cst_11 [1] : vector<16x128xf32> to vector<16xf32>
    %17 = vector.shape_cast %16 : vector<16xf32> to vector<16x1xf32>
    %18 = arith.maximumf %15, %17 : vector<16x1xf32>
    %c0_12 = arith.constant 0 : index
    %c0_13 = arith.constant 0 : index
    %19 = vector.load %arg16[%c0_12, %c0_13] : memref<16x1xf32, #tpu.memory_space<vmem>>, vector<16x1xf32>
    %20 = arith.subf %15, %18 : vector<16x1xf32>
    %21 = math.exp %20 : vector<16x1xf32>
    %22 = arith.mulf %19, %21 : vector<16x1xf32>
    %23 = vector.broadcast %18 : vector<16x1xf32> to vector<16x128xf32>
    %24 = arith.subf %10, %23 : vector<16x128xf32>
    %25 = math.exp %24 : vector<16x128xf32>
    %cst_14 = arith.constant dense<0.000000e+00> : vector<16xf32>
    %26 = vector.multi_reduction <add>, %25, %cst_14 [1] : vector<16x128xf32> to vector<16xf32>
    %27 = vector.shape_cast %26 : vector<16xf32> to vector<16x1xf32>
    %28 = arith.addf %22, %27 : vector<16x1xf32>
    %c0_15 = arith.constant 0 : index
    %c0_16 = arith.constant 0 : index
    %29 = vector.load %arg16[%c0_15, %c0_16] : memref<16x1xf32, #tpu.memory_space<vmem>>, vector<16x1xf32>
    tpu.vector_store %arg16[%c0_15, %c0_16], %28 {strides = array<i32>} : memref<16x1xf32, #tpu.memory_space<vmem>>, vector<16x1xf32>,
    %c0_17 = arith.constant 0 : index
    %c0_18 = arith.constant 0 : index
    %30 = vector.load %arg15[%c0_17, %c0_18] : memref<16x1xf32, #tpu.memory_space<vmem>>, vector<16x1xf32>
    tpu.vector_store %arg15[%c0_17, %c0_18], %18 {strides = array<i32>} : memref<16x1xf32, #tpu.memory_space<vmem>>, vector<16x1xf32>,
    %c0_i32_19 = arith.constant 0 : i32
    %31 = arith.cmpi eq, %arg0, %c0_i32_19 : i32
    %32 = arith.extui %31 : i1 to i32
    %c0_i32_20 = arith.constant 0 : i32
    %33 = arith.cmpi ne, %32, %c0_i32_20 : i32
    scf.if %33 {
      %c0_21 = arith.constant 0 : index
      %c0_22 = arith.constant 0 : index
      %34 = vector.load %arg11[%c0_21, %c0_22] : memref<16x128xf32, #tpu.memory_space<vmem>>, vector<16x128xf32>
      %c0_23 = arith.constant 0 : index
      %c0_24 = arith.constant 0 : index
      %35 = vector.load %arg15[%c0_23, %c0_24] : memref<16x1xf32, #tpu.memory_space<vmem>>, vector<16x1xf32>
      %c0_25 = arith.constant 0 : index
      %c0_26 = arith.constant 0 : index
      %36 = vector.load %arg16[%c0_25, %c0_26] : memref<16x1xf32, #tpu.memory_space<vmem>>, vector<16x1xf32>
      %37 = math.log %36 : vector<16x1xf32>
      %38 = arith.addf %35, %37 : vector<16x1xf32>
      %39 = vector.broadcast %38 : vector<16x1xf32> to vector<16x128xf32>
      %40 = arith.subf %34, %39 : vector<16x128xf32>
      %c0_27 = arith.constant 0 : index
      %c0_28 = arith.constant 0 : index
      %41 = vector.load %arg11[%c0_27, %c0_28] : memref<16x128xf32, #tpu.memory_space<vmem>>, vector<16x128xf32>
      tpu.vector_store %arg11[%c0_27, %c0_28], %40 {strides = array<i32>} : memref<16x128xf32, #tpu.memory_space<vmem>>, vector<16x128xf32>,
    } else {
    }
    return
  }
  func.func @transform_0(%arg0: i32) -> (i32, i32) {
    %c0_i32 = arith.constant 0 : i32
    %c0_i32_0 = arith.constant 0 : i32
    %c0_i32_1 = arith.constant 0 : i32
    return %c0_i32, %c0_i32_0 : i32, i32
  }
  func.func @transform_1(%arg0: i32) -> (i32, i32, i32) {
    %c0_i32 = arith.constant 0 : i32
    %c0_i32_0 = arith.constant 0 : i32
    %c0_i32_1 = arith.constant 0 : i32
    %c0_i32_2 = arith.constant 0 : i32
    return %c0_i32, %c0_i32_0, %c0_i32_1 : i32, i32, i32
  }
  func.func @transform_2(%arg0: i32) -> (i32, i32) {
    %c0_i32 = arith.constant 0 : i32
    %c0_i32_0 = arith.constant 0 : i32
    %c0_i32_1 = arith.constant 0 : i32
    return %c0_i32, %c0_i32_0 : i32, i32
  }
  func.func @transform_3(%arg0: i32) -> (i32, i32) {
    %c0_i32 = arith.constant 0 : i32
    %c0_i32_0 = arith.constant 0 : i32
    %c0_i32_1 = arith.constant 0 : i32
    return %c0_i32, %c0_i32_0 : i32, i32
  }
  func.func @transform_4(%arg0: i32) -> (i32, i32) {
    %c0_i32 = arith.constant 0 : i32
    %c0_i32_0 = arith.constant 0 : i32
    %c0_i32_1 = arith.constant 0 : i32
    return %c0_i32, %c0_i32_0 : i32, i32
  }
  func.func @transform_5(%arg0: i32) -> (i32, i32) {
    %c0_i32 = arith.constant 0 : i32
    %c0_i32_0 = arith.constant 0 : i32
    %c0_i32_1 = arith.constant 0 : i32
    return %c0_i32, %c0_i32_0 : i32, i32
  }
  func.func @transform_6(%arg0: i32) -> (i32, i32) {
    %c0_i32 = arith.constant 0 : i32
    %c0_i32_0 = arith.constant 0 : i32
    %c0_i32_1 = arith.constant 0 : i32
    return %c0_i32, %c0_i32_0 : i32, i32
  }
  func.func @transform_7(%arg0: i32) -> (i32, i32) {
    %c0_i32 = arith.constant 0 : i32
    %c0_i32_0 = arith.constant 0 : i32
    %c0_i32_1 = arith.constant 0 : i32
    return %c0_i32, %c0_i32_0 : i32, i32
  }
  func.func @transform_8(%arg0: i32) -> (i32, i32, i32) {
    %c0_i32 = arith.constant 0 : i32
    %c0_i32_0 = arith.constant 0 : i32
    %c0_i32_1 = arith.constant 0 : i32
    return %arg0, %c0_i32, %c0_i32_0 : i32, i32, i32
  }
  func.func @transform_9(%arg0: i32) -> (i32, i32, i32) {
    %c0_i32 = arith.constant 0 : i32
    %c0_i32_0 = arith.constant 0 : i32
    %c0_i32_1 = arith.constant 0 : i32
    return %arg0, %c0_i32, %c0_i32_0 : i32, i32, i32
  }
  func.func @transform_10(%arg0: i32) -> (i32, i32) {
    %c0_i32 = arith.constant 0 : i32
    %c0_i32_0 = arith.constant 0 : i32
    %c0_i32_1 = arith.constant 0 : i32
    return %c0_i32, %c0_i32_0 : i32, i32
  }
  func.func @transform_11(%arg0: i32) -> (i32, i32) {
    %c0_i32 = arith.constant 0 : i32
    %c0_i32_0 = arith.constant 0 : i32
    %c0_i32_1 = arith.constant 0 : i32
    return %c0_i32, %c0_i32_0 : i32, i32
  }
  func.func @transform_12(%arg0: i32) -> (i32, i32) {
    %c0_i32 = arith.constant 0 : i32
    %c0_i32_0 = arith.constant 0 : i32
    %c0_i32_1 = arith.constant 0 : i32
    return %c0_i32, %c0_i32_0 : i32, i32
  }
}

</mosaic_0001>

<llo_original>
// kernel: tpu_custom_call.1
$region0: #{tpu_custom_call.1}
  #allocation0 [shape = 'u32[]', space=smem, size = 0x4, offset = 0x4, fixed_abs, tag = 'smem constant byte address 0x4 - core index']
  #allocation1 [shape = 'u32[144,128]{1,0:T(1,128)}', space=vmem, size = 0x12000, scoped, tag = 'internal scratch']
  #allocation2 [shape = 'bf16[16,128]{1,0:T(16,128)(2,1)}', space=vmem, size = 0x1000, scoped, tag = 'scratch operand']
  #allocation3 [shape = 'f32[16,1]{1,0:T(8,128)}', space=vmem, size = 0x2000, scoped, tag = 'scratch operand']
  #allocation4 [shape = 'f32[16,1]{1,0:T(8,128)}', space=vmem, size = 0x2000, scoped, tag = 'scratch operand']
  %s0 = inlined_call_operand.hbm [shape: f32[16,128], index: 0, kind: input, shape index: {}]
  %s1 = inlined_call_operand.hbm [shape: f32[16,8,128], index: 1, kind: input, shape index: {}]
  %s2 = inlined_call_operand.hbm [shape: f32[16,128], index: 2, kind: input, shape index: {}]
  %s3 = inlined_call_operand.hbm [shape: f32[16,128], index: 3, kind: input, shape index: {}]
  %s4 = inlined_call_operand.hbm [shape: bf16[256,512], index: 4, kind: input, shape index: {}]
  %s5 = inlined_call_operand.vmem [shape: f32[1,512], index: 5, kind: input, shape index: {}]
  %s6 = inlined_call_operand.hbm [shape: bf16[256,128], index: 6, kind: input, shape index: {}]
  %s7 = inlined_call_operand.vmem [shape: f32[1,128], index: 7, kind: input, shape index: {}]
  %s8 = inlined_call_operand.hbm [shape: bf16[1,128,128], index: 8, kind: input, shape index: {}]
  %s9 = inlined_call_operand.vmem [shape: f32[1,1,128], index: 9, kind: input, shape index: {}]
  %s10 = inlined_call_operand.hbm [shape: f32[16,128], index: 10, kind: output, shape index: {0}]
  %s11 = inlined_call_operand.hbm [shape: f32[16,128], index: 11, kind: output, shape index: {1}]
  %s12 = inlined_call_operand.hbm [shape: f32[16,128], index: 12, kind: output, shape index: {2}]
  %13 = xla_tuple %s10, %s11, %s12
  %s14 = sld [smem:[#allocation0]]
  $region102: #{tpu_custom_call.1} parent=0
    _
  %s16 = ssub.s32 1, %s14
  %s17 = scalar_select 0, %s16, %s14
  $region1: #{tpu_custom_call.1} parent=0
    #allocation5 [shape = 'u8[8192]{0}', space=vmem, size = 0x2000, scoped, tag = 'input window, operand 0, single buffered']
    #allocation6 [shape = 's32[1]{0}', space=sflag, size = 0x4, scoped, tag = 'scoped memory for tpu_custom_call.1']
    #allocation7 [shape = 's32[1]{0}', space=sflag, size = 0x4, scoped, tag = 'scoped memory for tpu_custom_call.1']
    #allocation8 [shape = 'u8[65536]{0}', space=vmem, size = 0x10000, scoped, tag = 'input window, operand 1, single buffered']
    #allocation9 [shape = 's32[1]{0}', space=sflag, size = 0x4, scoped, tag = 'scoped memory for tpu_custom_call.1']
    #allocation10 [shape = 'u8[8192]{0}', space=vmem, size = 0x2000, scoped, tag = 'input window, operand 2, single buffered']
    #allocation11 [shape = 'u8[8192]{0}', space=vmem, size = 0x2000, scoped, tag = 'input window, operand 3, single buffered']
    #allocation12 [shape = 's32[1]{0}', space=sflag, size = 0x4, scoped, tag = 'scoped memory for tpu_custom_call.1']
    #allocation13 [shape = 'u8[262144]{0}', space=vmem, size = 0x40000, scoped, tag = 'input window, operand 4, single buffered']
    #allocation14 [shape = 'u8[65536]{0}', space=vmem, size = 0x10000, scoped, tag = 'input window, operand 6, single buffered']
    #allocation15 [shape = 's32[1]{0}', space=sflag, size = 0x4, scoped, tag = 'scoped memory for tpu_custom_call.1']
    #allocation16 [shape = 'u8[32768]{0}', space=vmem, size = 0x8000, scoped, tag = 'input window, operand 8, single buffered']
    #allocation17 [shape = 'u8[8192]{0}', space=vmem, size = 0x2000, scoped, tag = 'output window, operand 0, single buffered']
    #allocation18 [shape = 'u8[8192]{0}', space=vmem, size = 0x2000, scoped, tag = 'output window, operand 1, single buffered']
    #allocation19 [shape = 's32[1]{0}', space=sflag, size = 0x4, scoped, tag = 'scoped memory for tpu_custom_call.1']
    #allocation20 [shape = 'u8[8192]{0}', space=vmem, size = 0x2000, scoped, tag = 'output window, operand 2, single buffered']
    %18 = vsyncpa [#allocation6], 0
    %19 = vsyncpa [#allocation9], 0
    %20 = vsyncpa [#allocation12], 0
    %21 = vsyncpa [#allocation15], 0
    %22 = vsyncpa [#allocation7], 0
    %23 = vsyncpa [#allocation19], 0
    // Predicated region
    $region2: #{tpu_custom_call.1} parent=1 // pred_check
      _
    $region3: #{tpu_custom_call.1} parent=1 // pred_check_branch
      %25 = sbr.rel (0) target = $region5
    $region4: #{tpu_custom_call.1} parent=1 // pred_region
      %s27 = ssub.s32 256, 256
      %28 = vsyncadd [#allocation6], %s27
      %s29 = sshll.u32 [#allocation5], 4
      %s30 = int_to_ptr.vmem [resolvable:$true] %s29
      %35 = dma.hbm_to_vmem [thread:$0]  %s0, 256, %s30, [#allocation6], 128, 128, 8
    $region5: #{tpu_custom_call.1} parent=1 // pred_fallthru
      _
    // Predicated region
    $region6: #{tpu_custom_call.1} parent=1 // pred_check
      _
    $region7: #{tpu_custom_call.1} parent=1 // pred_check_branch
      %37 = sbr.rel (0) target = $region9
    $region8: #{tpu_custom_call.1} parent=1 // pred_region
      %s39 = ssub.s32 2048, 2048
      %40 = vsyncadd [#allocation9], %s39
      %s41 = sshll.u32 [#allocation8], 4
      %s42 = int_to_ptr.vmem [resolvable:$true] %s41
      %47 = dma.hbm_to_vmem [thread:$0]  %s1, 2048, %s42, [#allocation9], 128, 128, 8
    $region9: #{tpu_custom_call.1} parent=1 // pred_fallthru
      _
    // Predicated region
    $region10: #{tpu_custom_call.1} parent=1 // pred_check
      _
    $region11: #{tpu_custom_call.1} parent=1 // pred_check_branch
      %49 = sbr.rel (0) target = $region13
    $region12: #{tpu_custom_call.1} parent=1 // pred_region
      %s51 = ssub.s32 256, 256
      %52 = vsyncadd [#allocation9], %s51
      %s53 = sshll.u32 [#allocation10], 4
      %s54 = int_to_ptr.vmem [resolvable:$true] %s53
      %59 = dma.hbm_to_vmem [thread:$0]  %s2, 256, %s54, [#allocation9], 128, 128, 8
    $region13: #{tpu_custom_call.1} parent=1 // pred_fallthru
      _
    // Predicated region
    $region14: #{tpu_custom_call.1} parent=1 // pred_check
      _
    $region15: #{tpu_custom_call.1} parent=1 // pred_check_branch
      %61 = sbr.rel (0) target = $region17
    $region16: #{tpu_custom_call.1} parent=1 // pred_region
      %s63 = ssub.s32 256, 256
      %64 = vsyncadd [#allocation12], %s63
      %s65 = sshll.u32 [#allocation11], 4
      %s66 = int_to_ptr.vmem [resolvable:$true] %s65
      %71 = dma.hbm_to_vmem [thread:$0]  %s3, 256, %s66, [#allocation12], 128, 128, 8
    $region17: #{tpu_custom_call.1} parent=1 // pred_fallthru
      _
    // Predicated region
    $region18: #{tpu_custom_call.1} parent=1 // pred_check
      _
    $region19: #{tpu_custom_call.1} parent=1 // pred_check_branch
      %73 = sbr.rel (0) target = $region21
    $region20: #{tpu_custom_call.1} parent=1 // pred_region
      %s75 = ssub.s32 8192, 8192
      %76 = vsyncadd [#allocation12], %s75
      %s77 = sshll.u32 [#allocation13], 4
      %s78 = int_to_ptr.vmem [resolvable:$true] %s77
      %83 = dma.hbm_to_vmem [thread:$0]  %s4, 8192, %s78, [#allocation12], 256, 256, 16
    $region21: #{tpu_custom_call.1} parent=1 // pred_fallthru
      _
    // Predicated region
    $region22: #{tpu_custom_call.1} parent=1 // pred_check
      _
    $region23: #{tpu_custom_call.1} parent=1 // pred_check_branch
      %85 = sbr.rel (0) target = $region25
    $region24: #{tpu_custom_call.1} parent=1 // pred_region
      _
    $region25: #{tpu_custom_call.1} parent=1 // pred_fallthru
      _
    // Predicated region
    $region26: #{tpu_custom_call.1} parent=1 // pred_check
      _
    $region27: #{tpu_custom_call.1} parent=1 // pred_check_branch
      %87 = sbr.rel (0) target = $region29
    $region28: #{tpu_custom_call.1} parent=1 // pred_region
      %s89 = ssub.s32 2048, 2048
      %90 = vsyncadd [#allocation15], %s89
      %s91 = sshll.u32 [#allocation14], 4
      %s92 = int_to_ptr.vmem [resolvable:$true] %s91
      %97 = dma.hbm_to_vmem [thread:$0]  %s6, 2048, %s92, [#allocation15], 64, 64, 4
    $region29: #{tpu_custom_call.1} parent=1 // pred_fallthru
      _
    // Predicated region
    $region30: #{tpu_custom_call.1} parent=1 // pred_check
      _
    $region31: #{tpu_custom_call.1} parent=1 // pred_check_branch
      %99 = sbr.rel (0) target = $region33
    $region32: #{tpu_custom_call.1} parent=1 // pred_region
      _
    $region33: #{tpu_custom_call.1} parent=1 // pred_fallthru
      _
    // Predicated region
    $region34: #{tpu_custom_call.1} parent=1 // pred_check
      _
    $region35: #{tpu_custom_call.1} parent=1 // pred_check_branch
      %101 = sbr.rel (0) target = $region37
    $region36: #{tpu_custom_call.1} parent=1 // pred_region
      %s103 = ssub.s32 1024, 1024
      %104 = vsyncadd [#allocation15], %s103
      %s105 = sshll.u32 [#allocation16], 4
      %s106 = int_to_ptr.vmem [resolvable:$true] %s105
      %111 = dma.hbm_to_vmem [thread:$0]  %s8, 1024, %s106, [#allocation15], 64, 64, 4
    $region37: #{tpu_custom_call.1} parent=1 // pred_fallthru
      _
    // Predicated region
    $region38: #{tpu_custom_call.1} parent=1 // pred_check
      _
    $region39: #{tpu_custom_call.1} parent=1 // pred_check_branch
      %113 = sbr.rel (0) target = $region41
    $region40: #{tpu_custom_call.1} parent=1 // pred_region
      _
    $region41: #{tpu_custom_call.1} parent=1 // pred_fallthru
      _
    // Predicated region
    $region42: #{tpu_custom_call.1} parent=1 // pred_check
      _
    $region43: #{tpu_custom_call.1} parent=1 // pred_check_branch
      %115 = sbr.rel (0) target = $region45
    $region44: #{tpu_custom_call.1} parent=1 // pred_region
      %116 = dma.done [#allocation6], 256
    $region45: #{tpu_custom_call.1} parent=1 // pred_fallthru
      _
    // Predicated region
    $region46: #{tpu_custom_call.1} parent=1 // pred_check
      _
    $region47: #{tpu_custom_call.1} parent=1 // pred_check_branch
      %118 = sbr.rel (0) target = $region49
    $region48: #{tpu_custom_call.1} parent=1 // pred_region
      %119 = dma.done [#allocation9], 2048
    $region49: #{tpu_custom_call.1} parent=1 // pred_fallthru
      _
    // Predicated region
    $region50: #{tpu_custom_call.1} parent=1 // pred_check
      _
    $region51: #{tpu_custom_call.1} parent=1 // pred_check_branch
      %121 = sbr.rel (0) target = $region53
    $region52: #{tpu_custom_call.1} parent=1 // pred_region
      %122 = dma.done [#allocation9], 256
    $region53: #{tpu_custom_call.1} parent=1 // pred_fallthru
      _
    // Predicated region
    $region54: #{tpu_custom_call.1} parent=1 // pred_check
      _
    $region55: #{tpu_custom_call.1} parent=1 // pred_check_branch
      %124 = sbr.rel (0) target = $region57
    $region56: #{tpu_custom_call.1} parent=1 // pred_region
      %125 = dma.done [#allocation12], 256
    $region57: #{tpu_custom_call.1} parent=1 // pred_fallthru
      _
    // Predicated region
    $region58: #{tpu_custom_call.1} parent=1 // pred_check
      _
    $region59: #{tpu_custom_call.1} parent=1 // pred_check_branch
      %127 = sbr.rel (0) target = $region61
    $region60: #{tpu_custom_call.1} parent=1 // pred_region
      %128 = dma.done [#allocation12], 8192
    $region61: #{tpu_custom_call.1} parent=1 // pred_fallthru
      _
    // Predicated region
    $region62: #{tpu_custom_call.1} parent=1 // pred_check
      _
    $region63: #{tpu_custom_call.1} parent=1 // pred_check_branch
      %130 = sbr.rel (0) target = $region65
    $region64: #{tpu_custom_call.1} parent=1 // pred_region
      %131 = dma.done [#allocation15], 2048
    $region65: #{tpu_custom_call.1} parent=1 // pred_fallthru
      _
    // Predicated region
    $region66: #{tpu_custom_call.1} parent=1 // pred_check
      _
    $region67: #{tpu_custom_call.1} parent=1 // pred_check_branch
      %133 = sbr.rel (0) target = $region69
    $region68: #{tpu_custom_call.1} parent=1 // pred_region
      %134 = dma.done [#allocation15], 1024
    $region69: #{tpu_custom_call.1} parent=1 // pred_fallthru
      _
    %p136 = scmp.eq.s32.totalorder 0, 0
    // Predicated region
    $region70: #{tpu_custom_call.1} parent=1 // pred_check
      %p137 = pneg %p136
    $region71: #{tpu_custom_call.1} parent=1 // pred_check_branch
      %139 = sbr.rel (%p137) target = $region73
    $region72: #{tpu_custom_call.1} parent=1 // pred_region
      %v140 = vld [vmem:[#allocation10] sm:$0xff]
      %v141 = vld [vmem:[#allocation10 + $0x8] sm:$0xff]
      %v142 = vld [vmem:[#allocation11] sm:$0xff]
      %v143 = vld [vmem:[#allocation11 + $0x8] sm:$0xff]
      %v144 = vld [vmem:[#allocation5] sm:$0xff]
      %v145 = vld [vmem:[#allocation5 + $0x8] sm:$0xff]
      %v146 = vpack.c.bf16 %v145, %v144
      %v147 = vld [vmem:[#allocation13] sm:$0xff]
      %v148 = vld [vmem:[#allocation13 + $0x8] sm:$0xff]
      %v149 = vld [vmem:[#allocation13 + $0x10] sm:$0xff]
      %v150 = vld [vmem:[#allocation13 + $0x18] sm:$0xff]
      %v151 = vld [vmem:[#allocation13 + $0x20] sm:$0xff]
      %v152 = vld [vmem:[#allocation13 + $0x28] sm:$0xff]
      %v153 = vld [vmem:[#allocation13 + $0x30] sm:$0xff]
      %v154 = vld [vmem:[#allocation13 + $0x38] sm:$0xff]
      %v155 = vld [vmem:[#allocation13 + $0x40] sm:$0xff]
      %v156 = vld [vmem:[#allocation13 + $0x48] sm:$0xff]
      %v157 = vld [vmem:[#allocation13 + $0x50] sm:$0xff]
      %v158 = vld [vmem:[#allocation13 + $0x58] sm:$0xff]
      %v159 = vld [vmem:[#allocation13 + $0x60] sm:$0xff]
      %v160 = vld [vmem:[#allocation13 + $0x68] sm:$0xff]
      %v161 = vld [vmem:[#allocation13 + $0x70] sm:$0xff]
      %v162 = vld [vmem:[#allocation13 + $0x78] sm:$0xff]
      %v163 = vld [vmem:[#allocation13 + $0x80] sm:$0xff]
      %v164 = vld [vmem:[#allocation13 + $0x88] sm:$0xff]
      %v165 = vld [vmem:[#allocation13 + $0x90] sm:$0xff]
      %v166 = vld [vmem:[#allocation13 + $0x98] sm:$0xff]
      %v167 = vld [vmem:[#allocation13 + $0xa0] sm:$0xff]
      %v168 = vld [vmem:[#allocation13 + $0xa8] sm:$0xff]
      %v169 = vld [vmem:[#allocation13 + $0xb0] sm:$0xff]
      %v170 = vld [vmem:[#allocation13 + $0xb8] sm:$0xff]
      %v171 = vld [vmem:[#allocation13 + $0xc0] sm:$0xff]
      %v172 = vld [vmem:[#allocation13 + $0xc8] sm:$0xff]
      %v173 = vld [vmem:[#allocation13 + $0xd0] sm:$0xff]
      %v174 = vld [vmem:[#allocation13 + $0xd8] sm:$0xff]
      %v175 = vld [vmem:[#allocation13 + $0xe0] sm:$0xff]
      %v176 = vld [vmem:[#allocation13 + $0xe8] sm:$0xff]
      %v177 = vld [vmem:[#allocation13 + $0xf0] sm:$0xff]
      %v178 = vld [vmem:[#allocation13 + $0xf8] sm:$0xff]
      %v179 = vpack.c.bf16 %v141, %v140
      %v180 = vld [vmem:[#allocation13 + $0x100] sm:$0xff]
      %v181 = vld [vmem:[#allocation13 + $0x108] sm:$0xff]
      %v182 = vld [vmem:[#allocation13 + $0x110] sm:$0xff]
      %v183 = vld [vmem:[#allocation13 + $0x118] sm:$0xff]
      %v184 = vld [vmem:[#allocation13 + $0x120] sm:$0xff]
      %v185 = vld [vmem:[#allocation13 + $0x128] sm:$0xff]
      %v186 = vld [vmem:[#allocation13 + $0x130] sm:$0xff]
      %v187 = vld [vmem:[#allocation13 + $0x138] sm:$0xff]
      %v188 = vld [vmem:[#allocation13 + $0x140] sm:$0xff]
      %v189 = vld [vmem:[#allocation13 + $0x148] sm:$0xff]
      %v190 = vld [vmem:[#allocation13 + $0x150] sm:$0xff]
      %v191 = vld [vmem:[#allocation13 + $0x158] sm:$0xff]
      %v192 = vld [vmem:[#allocation13 + $0x160] sm:$0xff]
      %v193 = vld [vmem:[#allocation13 + $0x168] sm:$0xff]
      %v194 = vld [vmem:[#allocation13 + $0x170] sm:$0xff]
      %v195 = vld [vmem:[#allocation13 + $0x178] sm:$0xff]
      %v196 = vld [vmem:[#allocation13 + $0x180] sm:$0xff]
      %v197 = vld [vmem:[#allocation13 + $0x188] sm:$0xff]
      %v198 = vld [vmem:[#allocation13 + $0x190] sm:$0xff]
      %v199 = vld [vmem:[#allocation13 + $0x198] sm:$0xff]
      %v200 = vld [vmem:[#allocation13 + $0x1a0] sm:$0xff]
      %v201 = vld [vmem:[#allocation13 + $0x1a8] sm:$0xff]
      %v202 = vld [vmem:[#allocation13 + $0x1b0] sm:$0xff]
      %v203 = vld [vmem:[#allocation13 + $0x1b8] sm:$0xff]
      %v204 = vld [vmem:[#allocation13 + $0x1c0] sm:$0xff]
      %v205 = vld [vmem:[#allocation13 + $0x1c8] sm:$0xff]
      %v206 = vld [vmem:[#allocation13 + $0x1d0] sm:$0xff]
      %v207 = vld [vmem:[#allocation13 + $0x1d8] sm:$0xff]
      %v208 = vld [vmem:[#allocation13 + $0x1e0] sm:$0xff]
      %v209 = vld [vmem:[#allocation13 + $0x1e8] sm:$0xff]
      %v210 = vld [vmem:[#allocation13 + $0x1f0] sm:$0xff]
      %v211 = vld [vmem:[#allocation13 + $0x1f8] sm:$0xff]
      %v244 = vunpack.c.l.b16 %v180
      %v245 = vunpack.c.h.b16 %v180
      %v246 = vunpack.c.l.b16 %v181
      %v247 = vunpack.c.h.b16 %v181
      %v248 = vunpack.c.l.b16 %v182
      %v249 = vunpack.c.h.b16 %v182
      %v250 = vunpack.c.l.b16 %v183
      %v251 = vunpack.c.h.b16 %v183
      %v252 = vunpack.c.l.b16 %v184
      %v253 = vunpack.c.h.b16 %v184
      %v254 = vunpack.c.l.b16 %v185
      %v255 = vunpack.c.h.b16 %v185
      %v256 = vunpack.c.l.b16 %v186
      %v257 = vunpack.c.h.b16 %v186
      %v258 = vunpack.c.l.b16 %v187
      %v259 = vunpack.c.h.b16 %v187
      %v260 = vunpack.c.l.b16 %v188
      %v261 = vunpack.c.h.b16 %v188
      %v262 = vunpack.c.l.b16 %v189
      %v263 = vunpack.c.h.b16 %v189
      %v264 = vunpack.c.l.b16 %v190
      %v265 = vunpack.c.h.b16 %v190
      %v266 = vunpack.c.l.b16 %v191
      %v267 = vunpack.c.h.b16 %v191
      %v268 = vunpack.c.l.b16 %v192
      %v269 = vunpack.c.h.b16 %v192
      %v270 = vunpack.c.l.b16 %v193
      %v271 = vunpack.c.h.b16 %v193
      %v272 = vunpack.c.l.b16 %v194
      %v273 = vunpack.c.h.b16 %v194
      %v274 = vunpack.c.l.b16 %v195
      %v275 = vunpack.c.h.b16 %v195
      %v276 = vunpack.c.l.b16 %v196
      %v277 = vunpack.c.h.b16 %v196
      %v278 = vunpack.c.l.b16 %v197
      %v279 = vunpack.c.h.b16 %v197
      %v280 = vunpack.c.l.b16 %v198
      %v281 = vunpack.c.h.b16 %v198
      %v282 = vunpack.c.l.b16 %v199
      %v283 = vunpack.c.h.b16 %v199
      %v284 = vunpack.c.l.b16 %v200
      %v285 = vunpack.c.h.b16 %v200
      %v286 = vunpack.c.l.b16 %v201
      %v287 = vunpack.c.h.b16 %v201
      %v288 = vunpack.c.l.b16 %v202
      %v289 = vunpack.c.h.b16 %v202
      %v290 = vunpack.c.l.b16 %v203
      %v291 = vunpack.c.h.b16 %v203
      %v292 = vunpack.c.l.b16 %v204
      %v293 = vunpack.c.h.b16 %v204
      %v294 = vunpack.c.l.b16 %v205
      %v295 = vunpack.c.h.b16 %v205
      %v296 = vunpack.c.l.b16 %v206
      %v297 = vunpack.c.h.b16 %v206
      %v298 = vunpack.c.l.b16 %v207
      %v299 = vunpack.c.h.b16 %v207
      %v300 = vunpack.c.l.b16 %v208
      %v301 = vunpack.c.h.b16 %v208
      %v302 = vunpack.c.l.b16 %v209
      %v303 = vunpack.c.h.b16 %v209
      %v304 = vunpack.c.l.b16 %v210
      %v305 = vunpack.c.h.b16 %v210
      %v306 = vunpack.c.l.b16 %v211
      %v307 = vunpack.c.h.b16 %v211
      %v308 = vpack.c.b16 %v248, %v244
      %v309 = vpack.c.b16 %v249, %v245
      %v310 = vpack.c.b16 %v250, %v246
      %v311 = vpack.c.b16 %v251, %v247
      %v312 = vpack.c.b16 %v256, %v252
      %v313 = vpack.c.b16 %v257, %v253
      %v314 = vpack.c.b16 %v258, %v254
      %v315 = vpack.c.b16 %v259, %v255
      %v316 = vpack.c.b16 %v264, %v260
      %v317 = vpack.c.b16 %v265, %v261
      %v318 = vpack.c.b16 %v266, %v262
      %v319 = vpack.c.b16 %v267, %v263
      %v320 = vpack.c.b16 %v272, %v268
      %v321 = vpack.c.b16 %v273, %v269
      %v322 = vpack.c.b16 %v274, %v270
      %v323 = vpack.c.b16 %v275, %v271
      %v324 = vpack.c.b16 %v280, %v276
      %v325 = vpack.c.b16 %v281, %v277
      %v326 = vpack.c.b16 %v282, %v278
      %v327 = vpack.c.b16 %v283, %v279
      %v328 = vpack.c.b16 %v288, %v284
      %v329 = vpack.c.b16 %v289, %v285
      %v330 = vpack.c.b16 %v290, %v286
      %v331 = vpack.c.b16 %v291, %v287
      %v332 = vpack.c.b16 %v296, %v292
      %v333 = vpack.c.b16 %v297, %v293
      %v334 = vpack.c.b16 %v298, %v294
      %v335 = vpack.c.b16 %v299, %v295
      %v336 = vpack.c.b16 %v304, %v300
      %v337 = vpack.c.b16 %v305, %v301
      %v338 = vpack.c.b16 %v306, %v302
      %v339 = vpack.c.b16 %v307, %v303
      %372 = vmatprep.subr.bf16.mxu0 %v309
      %373 = vmatpush1.bf16.msra.mxu0 %v308
      %374 = vmatprep.subr.bf16.mxu0 %v313
      %375 = vmatpush1.bf16.msra.mxu0 %v312
      %376 = vmatprep.subr.bf16.mxu0 %v317
      %377 = vmatpush1.bf16.msra.mxu0 %v316
      %378 = vmatprep.subr.bf16.mxu0 %v321
      %379 = vmatpush1.bf16.msra.mxu0 %v320
      %380 = vmatprep.subr.bf16.mxu0 %v325
      %381 = vmatpush1.bf16.msra.mxu0 %v324
      %382 = vmatprep.subr.bf16.mxu0 %v329
      %383 = vmatpush1.bf16.msra.mxu0 %v328
      %384 = vmatprep.subr.bf16.mxu0 %v333
      %385 = vmatpush1.bf16.msra.mxu0 %v332
      %386 = vmatprep.subr.bf16.mxu0 %v337
      %387 = vmatpush1.bf16.msra.mxu0 %v336
      %388 = vmatprep.subr.bf16.mxu0 0
      %389 = vmatpush1.bf16.msra.mxu0 0
      %390 = vmatprep.subr.bf16.mxu0 0
      %391 = vmatpush1.bf16.msra.mxu0 0
      %392 = vmatprep.subr.bf16.mxu0 0
      %393 = vmatpush1.bf16.msra.mxu0 0
      %394 = vmatprep.subr.bf16.mxu0 0
      %395 = vmatpush1.bf16.msra.mxu0 0
      %396 = vmatprep.subr.bf16.mxu0 0
      %397 = vmatpush1.bf16.msra.mxu0 0
      %398 = vmatprep.subr.bf16.mxu0 0
      %399 = vmatpush1.bf16.msra.mxu0 0
      %400 = vmatprep.subr.bf16.mxu0 0
      %401 = vmatpush1.bf16.msra.mxu0 0
      %402 = vmatprep.subr.bf16.mxu0 0
      %403 = vmatpush1.bf16.msra.mxu0 0
      %404 = vmatprep.mubr.bf16.mxu0 0
      %405 = vmatmul.mubr.bf16.gmra.mrb[0].mxu0 %v179
      %v406 = vpop.f32.mrb[0].mxu0
      %v407 = vadd.f32 0.0, %v406
      %v408 = vpop.f32.mrb[0].mxu0
      %v409 = vadd.f32 0.0, %v408
      %v410 = vpop.f32.mrb[0].mxu0
      %v411 = vadd.f32 0.0, %v410
      %v412 = vpop.f32.mrb[0].mxu0
      %v413 = vadd.f32 0.0, %v412
      %414 = vdwg.mxu0
      %415 = vmatprep.subr.bf16.mxu0 %v311
      %416 = vmatpush1.bf16.msra.mxu0 %v310
      %417 = vmatprep.subr.bf16.mxu0 %v315
      %418 = vmatpush1.bf16.msra.mxu0 %v314
      %419 = vmatprep.subr.bf16.mxu0 %v319
      %420 = vmatpush1.bf16.msra.mxu0 %v318
      %421 = vmatprep.subr.bf16.mxu0 %v323
      %422 = vmatpush1.bf16.msra.mxu0 %v322
      %423 = vmatprep.subr.bf16.mxu0 %v327
      %424 = vmatpush1.bf16.msra.mxu0 %v326
      %425 = vmatprep.subr.bf16.mxu0 %v331
      %426 = vmatpush1.bf16.msra.mxu0 %v330
      %427 = vmatprep.subr.bf16.mxu0 %v335
      %428 = vmatpush1.bf16.msra.mxu0 %v334
      %429 = vmatprep.subr.bf16.mxu0 %v339
      %430 = vmatpush1.bf16.msra.mxu0 %v338
      %431 = vmatprep.subr.bf16.mxu0 0
      %432 = vmatpush1.bf16.msra.mxu0 0
      %433 = vmatprep.subr.bf16.mxu0 0
      %434 = vmatpush1.bf16.msra.mxu0 0
      %435 = vmatprep.subr.bf16.mxu0 0
      %436 = vmatpush1.bf16.msra.mxu0 0
      %437 = vmatprep.subr.bf16.mxu0 0
      %438 = vmatpush1.bf16.msra.mxu0 0
      %439 = vmatprep.subr.bf16.mxu0 0
      %440 = vmatpush1.bf16.msra.mxu0 0
      %441 = vmatprep.subr.bf16.mxu0 0
      %442 = vmatpush1.bf16.msra.mxu0 0
      %443 = vmatprep.subr.bf16.mxu0 0
      %444 = vmatpush1.bf16.msra.mxu0 0
      %445 = vmatprep.subr.bf16.mxu0 0
      %446 = vmatpush1.bf16.msra.mxu0 0
      %447 = vmatprep.mubr.bf16.mxu0 0
      %448 = vmatmul.mubr.bf16.gmra.mrb[0].mxu0 %v179
      %v449 = vpop.f32.mrb[0].mxu0
      %v450 = vadd.f32 0.0, %v449
      %v451 = vpop.f32.mrb[0].mxu0
      %v452 = vadd.f32 0.0, %v451
      %v453 = vpop.f32.mrb[0].mxu0
      %v454 = vadd.f32 0.0, %v453
      %v455 = vpop.f32.mrb[0].mxu0
      %v456 = vadd.f32 0.0, %v455
      %457 = vdwg.mxu0
      %v490 = vunpack.c.l.b16 %v147
      %v491 = vunpack.c.h.b16 %v147
      %v492 = vunpack.c.l.b16 %v148
      %v493 = vunpack.c.h.b16 %v148
      %v494 = vunpack.c.l.b16 %v149
      %v495 = vunpack.c.h.b16 %v149
      %v496 = vunpack.c.l.b16 %v150
      %v497 = vunpack.c.h.b16 %v150
      %v498 = vunpack.c.l.b16 %v151
      %v499 = vunpack.c.h.b16 %v151
      %v500 = vunpack.c.l.b16 %v152
      %v501 = vunpack.c.h.b16 %v152
      %v502 = vunpack.c.l.b16 %v153
      %v503 = vunpack.c.h.b16 %v153
      %v504 = vunpack.c.l.b16 %v154
      %v505 = vunpack.c.h.b16 %v154
      %v506 = vunpack.c.l.b16 %v155
      %v507 = vunpack.c.h.b16 %v155
      %v508 = vunpack.c.l.b16 %v156
      %v509 = vunpack.c.h.b16 %v156
      %v510 = vunpack.c.l.b16 %v157
      %v511 = vunpack.c.h.b16 %v157
      %v512 = vunpack.c.l.b16 %v158
      %v513 = vunpack.c.h.b16 %v158
      %v514 = vunpack.c.l.b16 %v159
      %v515 = vunpack.c.h.b16 %v159
      %v516 = vunpack.c.l.b16 %v160
      %v517 = vunpack.c.h.b16 %v160
      %v518 = vunpack.c.l.b16 %v161
      %v519 = vunpack.c.h.b16 %v161
      %v520 = vunpack.c.l.b16 %v162
      %v521 = vunpack.c.h.b16 %v162
      %v522 = vunpack.c.l.b16 %v163
      %v523 = vunpack.c.h.b16 %v163
      %v524 = vunpack.c.l.b16 %v164
      %v525 = vunpack.c.h.b16 %v164
      %v526 = vunpack.c.l.b16 %v165
      %v527 = vunpack.c.h.b16 %v165
      %v528 = vunpack.c.l.b16 %v166
      %v529 = vunpack.c.h.b16 %v166
      %v530 = vunpack.c.l.b16 %v167
      %v531 = vunpack.c.h.b16 %v167
      %v532 = vunpack.c.l.b16 %v168
      %v533 = vunpack.c.h.b16 %v168
      %v534 = vunpack.c.l.b16 %v169
      %v535 = vunpack.c.h.b16 %v169
      %v536 = vunpack.c.l.b16 %v170
      %v537 = vunpack.c.h.b16 %v170
      %v538 = vunpack.c.l.b16 %v171
      %v539 = vunpack.c.h.b16 %v171
      %v540 = vunpack.c.l.b16 %v172
      %v541 = vunpack.c.h.b16 %v172
      %v542 = vunpack.c.l.b16 %v173
      %v543 = vunpack.c.h.b16 %v173
      %v544 = vunpack.c.l.b16 %v174
      %v545 = vunpack.c.h.b16 %v174
      %v546 = vunpack.c.l.b16 %v175
      %v547 = vunpack.c.h.b16 %v175
      %v548 = vunpack.c.l.b16 %v176
      %v549 = vunpack.c.h.b16 %v176
      %v550 = vunpack.c.l.b16 %v177
      %v551 = vunpack.c.h.b16 %v177
      %v552 = vunpack.c.l.b16 %v178
      %v553 = vunpack.c.h.b16 %v178
      %v554 = vpack.c.b16 %v494, %v490
      %v555 = vpack.c.b16 %v495, %v491
      %v556 = vpack.c.b16 %v496, %v492
      %v557 = vpack.c.b16 %v497, %v493
      %v558 = vpack.c.b16 %v502, %v498
      %v559 = vpack.c.b16 %v503, %v499
      %v560 = vpack.c.b16 %v504, %v500
      %v561 = vpack.c.b16 %v505, %v501
      %v562 = vpack.c.b16 %v510, %v506
      %v563 = vpack.c.b16 %v511, %v507
      %v564 = vpack.c.b16 %v512, %v508
      %v565 = vpack.c.b16 %v513, %v509
      %v566 = vpack.c.b16 %v518, %v514
      %v567 = vpack.c.b16 %v519, %v515
      %v568 = vpack.c.b16 %v520, %v516
      %v569 = vpack.c.b16 %v521, %v517
      %v570 = vpack.c.b16 %v526, %v522
      %v571 = vpack.c.b16 %v527, %v523
      %v572 = vpack.c.b16 %v528, %v524
      %v573 = vpack.c.b16 %v529, %v525
      %v574 = vpack.c.b16 %v534, %v530
      %v575 = vpack.c.b16 %v535, %v531
      %v576 = vpack.c.b16 %v536, %v532
      %v577 = vpack.c.b16 %v537, %v533
      %v578 = vpack.c.b16 %v542, %v538
      %v579 = vpack.c.b16 %v543, %v539
      %v580 = vpack.c.b16 %v544, %v540
      %v581 = vpack.c.b16 %v545, %v541
      %v582 = vpack.c.b16 %v550, %v546
      %v583 = vpack.c.b16 %v551, %v547
      %v584 = vpack.c.b16 %v552, %v548
      %v585 = vpack.c.b16 %v553, %v549
      %618 = vmatprep.subr.bf16.mxu0 %v555
      %619 = vmatpush1.bf16.msra.mxu0 %v554
      %620 = vmatprep.subr.bf16.mxu0 %v559
      %621 = vmatpush1.bf16.msra.mxu0 %v558
      %622 = vmatprep.subr.bf16.mxu0 %v563
      %623 = vmatpush1.bf16.msra.mxu0 %v562
      %624 = vmatprep.subr.bf16.mxu0 %v567
      %625 = vmatpush1.bf16.msra.mxu0 %v566
      %626 = vmatprep.subr.bf16.mxu0 %v571
      %627 = vmatpush1.bf16.msra.mxu0 %v570
      %628 = vmatprep.subr.bf16.mxu0 %v575
      %629 = vmatpush1.bf16.msra.mxu0 %v574
      %630 = vmatprep.subr.bf16.mxu0 %v579
      %631 = vmatpush1.bf16.msra.mxu0 %v578
      %632 = vmatprep.subr.bf16.mxu0 %v583
      %633 = vmatpush1.bf16.msra.mxu0 %v582
      %634 = vmatprep.subr.bf16.mxu0 0
      %635 = vmatpush1.bf16.msra.mxu0 0
      %636 = vmatprep.subr.bf16.mxu0 0
      %637 = vmatpush1.bf16.msra.mxu0 0
      %638 = vmatprep.subr.bf16.mxu0 0
      %639 = vmatpush1.bf16.msra.mxu0 0
      %640 = vmatprep.subr.bf16.mxu0 0
      %641 = vmatpush1.bf16.msra.mxu0 0
      %642 = vmatprep.subr.bf16.mxu0 0
      %643 = vmatpush1.bf16.msra.mxu0 0
      %644 = vmatprep.subr.bf16.mxu0 0
      %645 = vmatpush1.bf16.msra.mxu0 0
      %646 = vmatprep.subr.bf16.mxu0 0
      %647 = vmatpush1.bf16.msra.mxu0 0
      %648 = vmatprep.subr.bf16.mxu0 0
      %649 = vmatpush1.bf16.msra.mxu0 0
      %650 = vmatprep.mubr.bf16.mxu0 0
      %651 = vmatmul.mubr.bf16.gmra.mrb[0].mxu0 %v146
      %v652 = vpop.f32.mrb[0].mxu0
      %v653 = vadd.f32 %v407, %v652
      %v654 = vpop.f32.mrb[0].mxu0
      %v655 = vadd.f32 %v409, %v654
      %v656 = vpop.f32.mrb[0].mxu0
      %v657 = vadd.f32 %v411, %v656
      %v658 = vpop.f32.mrb[0].mxu0
      %v659 = vadd.f32 %v413, %v658
      %660 = vdwg.mxu0
      %661 = vmatprep.subr.bf16.mxu0 %v557
      %662 = vmatpush1.bf16.msra.mxu0 %v556
      %663 = vmatprep.subr.bf16.mxu0 %v561
      %664 = vmatpush1.bf16.msra.mxu0 %v560
      %665 = vmatprep.subr.bf16.mxu0 %v565
      %666 = vmatpush1.bf16.msra.mxu0 %v564
      %667 = vmatprep.subr.bf16.mxu0 %v569
      %668 = vmatpush1.bf16.msra.mxu0 %v568
      %669 = vmatprep.subr.bf16.mxu0 %v573
      %670 = vmatpush1.bf16.msra.mxu0 %v572
      %671 = vmatprep.subr.bf16.mxu0 %v577
      %672 = vmatpush1.bf16.msra.mxu0 %v576
      %673 = vmatprep.subr.bf16.mxu0 %v581
      %674 = vmatpush1.bf16.msra.mxu0 %v580
      %675 = vmatprep.subr.bf16.mxu0 %v585
      %676 = vmatpush1.bf16.msra.mxu0 %v584
      %677 = vmatprep.subr.bf16.mxu0 0
      %678 = vmatpush1.bf16.msra.mxu0 0
      %679 = vmatprep.subr.bf16.mxu0 0
      %680 = vmatpush1.bf16.msra.mxu0 0
      %681 = vmatprep.subr.bf16.mxu0 0
      %682 = vmatpush1.bf16.msra.mxu0 0
      %683 = vmatprep.subr.bf16.mxu0 0
      %684 = vmatpush1.bf16.msra.mxu0 0
      %685 = vmatprep.subr.bf16.mxu0 0
      %686 = vmatpush1.bf16.msra.mxu0 0
      %687 = vmatprep.subr.bf16.mxu0 0
      %688 = vmatpush1.bf16.msra.mxu0 0
      %689 = vmatprep.subr.bf16.mxu0 0
      %690 = vmatpush1.bf16.msra.mxu0 0
      %691 = vmatprep.subr.bf16.mxu0 0
      %692 = vmatpush1.bf16.msra.mxu0 0
      %693 = vmatprep.mubr.bf16.mxu0 0
      %694 = vmatmul.mubr.bf16.gmra.mrb[0].mxu0 %v146
      %v695 = vpop.f32.mrb[0].mxu0
      %v696 = vadd.f32 %v450, %v695
      %v697 = vpop.f32.mrb[0].mxu0
      %v698 = vadd.f32 %v452, %v697
      %v699 = vpop.f32.mrb[0].mxu0
      %v700 = vadd.f32 %v454, %v699
      %v701 = vpop.f32.mrb[0].mxu0
      %v702 = vadd.f32 %v456, %v701
      %703 = vdwg.mxu0
      %v704 = vld [vmem:[%s5] sm:$0xf]
      %v706 = vlaneseq
      %v707 = vshrl.u32 %v706, 7
      %v708 = vsub.s32 0, %v707
      %v709 = vrot.slane %v704, %v708
      %v710 = vlaneseq
      %v711 = vshrl.u32 %v710, 7
      %v712 = vsub.s32 1, %v711
      %v713 = vrot.slane %v704, %v712
      %v714 = vlaneseq
      %v715 = vshrl.u32 %v714, 7
      %v716 = vsub.s32 2, %v715
      %v717 = vrot.slane %v704, %v716
      %v718 = vlaneseq
      %v719 = vshrl.u32 %v718, 7
      %v720 = vsub.s32 3, %v719
      %v721 = vrot.slane %v704, %v720
      %v726 = vadd.f32 %v653, %v709
      %v727 = vadd.f32 %v655, %v713
      %v728 = vadd.f32 %v696, %v717
      %v729 = vadd.f32 %v698, %v721
      %v730 = vadd.f32 %v657, %v709
      %v731 = vadd.f32 %v659, %v713
      %v732 = vadd.f32 %v700, %v717
      %v733 = vadd.f32 %v702, %v721
      %v734 = vxor.u32 %v726, 2147483648
      %v735 = vxor.u32 %v730, 2147483648
      %v736 = vmul.f32 %v734, 1.442695
      %v737 = vpow.pop %v736
      %v738 = vmul.f32 %v735, 1.442695
      %v739 = vpow.pop %v738
      %v740 = vadd.f32 %v737, 1.0
      %v741 = vadd.f32 %v739, 1.0
      %v742 = vrcp.pop %v740
      %v743 = vmul.f32 1.0, %v742
      %v744 = vrcp.pop %v741
      %v745 = vmul.f32 1.0, %v744
      %v746 = vxor.u32 %v727, 2147483648
      %v747 = vxor.u32 %v731, 2147483648
      %v748 = vmul.f32 %v746, 1.442695
      %v749 = vpow.pop %v748
      %v750 = vmul.f32 %v747, 1.442695
      %v751 = vpow.pop %v750
      %v752 = vadd.f32 %v749, 1.0
      %v753 = vadd.f32 %v751, 1.0
      %v754 = vrcp.pop %v752
      %v755 = vmul.f32 1.0, %v754
      %v756 = vrcp.pop %v753
      %v757 = vmul.f32 1.0, %v756
      %v758 = vtanh.pop %v728
      %v759 = vtanh.pop %v732
      %v760 = vxor.u32 %v729, 2147483648
      %v761 = vxor.u32 %v733, 2147483648
      %v762 = vmul.f32 %v760, 1.442695
      %v763 = vpow.pop %v762
      %v764 = vmul.f32 %v761, 1.442695
      %v765 = vpow.pop %v764
      %v766 = vadd.f32 %v763, 1.0
      %v767 = vadd.f32 %v765, 1.0
      %v768 = vrcp.pop %v766
      %v769 = vmul.f32 1.0, %v768
      %v770 = vrcp.pop %v767
      %v771 = vmul.f32 1.0, %v770
      %v772 = vmul.f32 %v755, %v142
      %v773 = vmul.f32 %v757, %v143
      %v774 = vmul.f32 %v743, %v758
      %v775 = vmul.f32 %v745, %v759
      %v776 = vadd.f32 %v772, %v774
      %v777 = vadd.f32 %v773, %v775
      %v778 = vtanh.pop %v776
      %v779 = vtanh.pop %v777
      %v780 = vmul.f32 %v769, %v778
      %v781 = vmul.f32 %v771, %v779
      %782 = vst [vmem:[#allocation18] sm:$0xff] %v780
      %783 = vst [vmem:[#allocation18 + $0x8] sm:$0xff] %v781
      %784 = vst [vmem:[#allocation20] sm:$0xff] %v776
      %785 = vst [vmem:[#allocation20 + $0x8] sm:$0xff] %v777
      %v786 = vld [vmem:[#allocation8] sm:$0xff]
      %v787 = vld [vmem:[#allocation8 + $0x8] sm:$0xff]
      %v788 = vld [vmem:[#allocation8 + $0x10] sm:$0xff]
      %v789 = vld [vmem:[#allocation8 + $0x18] sm:$0xff]
      %v790 = vld [vmem:[#allocation8 + $0x20] sm:$0xff]
      %v791 = vld [vmem:[#allocation8 + $0x28] sm:$0xff]
      %v792 = vld [vmem:[#allocation8 + $0x30] sm:$0xff]
      %v793 = vld [vmem:[#allocation8 + $0x38] sm:$0xff]
      %v794 = vld [vmem:[#allocation8 + $0x40] sm:$0xff]
      %v795 = vld [vmem:[#allocation8 + $0x48] sm:$0xff]
      %v796 = vld [vmem:[#allocation8 + $0x50] sm:$0xff]
      %v797 = vld [vmem:[#allocation8 + $0x58] sm:$0xff]
      %v798 = vld [vmem:[#allocation8 + $0x60] sm:$0xff]
      %v799 = vld [vmem:[#allocation8 + $0x68] sm:$0xff]
      %v800 = vld [vmem:[#allocation8 + $0x70] sm:$0xff]
      %v801 = vld [vmem:[#allocation8 + $0x78] sm:$0xff]
      %v804 = vcombine.high %v780, %v780
      %v806 = vunpack.c.l.s4 1966171168
      %v807 = vunpack.c.0.s8 %v806
      %v808 = vlaneseq
      %v809 = vshrl.u32 %v808, 7
      %v810 = vsub.s32 %v807, %v809
      %v811 = vrot.slane %v780, %v810
      %v813 = vunpack.c.l.s4 1966171168
      %v814 = vunpack.c.0.s8 %v813
      %v815 = vlaneseq
      %v816 = vshrl.u32 %v815, 7
      %v817 = vsub.s32 %v814, %v816
      %v818 = vrot.slane %v804, %v817
      %v819 = vcombine.high %v811, %v811
      %v820 = vcombine.high %v818, %v818
      %v822 = vunpack.c.l.s4 1966171168
      %v823 = vunpack.c.0.s8 %v822
      %v824 = vlaneseq
      %v825 = vshrl.u32 %v824, 7
      %v826 = vsub.s32 %v823, %v825
      %v827 = vrot.slane %v811, %v826
      %v829 = vunpack.c.l.s4 1966171168
      %v830 = vunpack.c.0.s8 %v829
      %v831 = vlaneseq
      %v832 = vshrl.u32 %v831, 7
      %v833 = vsub.s32 %v830, %v832
      %v834 = vrot.slane %v818, %v833
      %v836 = vunpack.c.l.s4 1966171168
      %v837 = vunpack.c.0.s8 %v836
      %v838 = vlaneseq
      %v839 = vshrl.u32 %v838, 7
      %v840 = vsub.s32 %v837, %v839
      %v841 = vrot.slane %v819, %v840
      %v843 = vunpack.c.l.s4 1966171168
      %v844 = vunpack.c.0.s8 %v843
      %v845 = vlaneseq
      %v846 = vshrl.u32 %v845, 7
      %v847 = vsub.s32 %v844, %v846
      %v848 = vrot.slane %v820, %v847
      %v849 = vcombine.high %v827, %v827
      %v850 = vcombine.high %v834, %v834
      %v851 = vcombine.high %v841, %v841
      %v852 = vcombine.high %v848, %v848
      %v853 = vcombine.high %v781, %v781
      %v855 = vunpack.c.l.s4 1966171168
      %v856 = vunpack.c.0.s8 %v855
      %v857 = vlaneseq
      %v858 = vshrl.u32 %v857, 7
      %v859 = vsub.s32 %v856, %v858
      %v860 = vrot.slane %v781, %v859
      %v862 = vunpack.c.l.s4 1966171168
      %v863 = vunpack.c.0.s8 %v862
      %v864 = vlaneseq
      %v865 = vshrl.u32 %v864, 7
      %v866 = vsub.s32 %v863, %v865
      %v867 = vrot.slane %v853, %v866
      %v868 = vcombine.high %v860, %v860
      %v869 = vcombine.high %v867, %v867
      %v871 = vunpack.c.l.s4 1966171168
      %v872 = vunpack.c.0.s8 %v871
      %v873 = vlaneseq
      %v874 = vshrl.u32 %v873, 7
      %v875 = vsub.s32 %v872, %v874
      %v876 = vrot.slane %v860, %v875
      %v878 = vunpack.c.l.s4 1966171168
      %v879 = vunpack.c.0.s8 %v878
      %v880 = vlaneseq
      %v881 = vshrl.u32 %v880, 7
      %v882 = vsub.s32 %v879, %v881
      %v883 = vrot.slane %v867, %v882
      %v885 = vunpack.c.l.s4 1966171168
      %v886 = vunpack.c.0.s8 %v885
      %v887 = vlaneseq
      %v888 = vshrl.u32 %v887, 7
      %v889 = vsub.s32 %v886, %v888
      %v890 = vrot.slane %v868, %v889
      %v892 = vunpack.c.l.s4 1966171168
      %v893 = vunpack.c.0.s8 %v892
      %v894 = vlaneseq
      %v895 = vshrl.u32 %v894, 7
      %v896 = vsub.s32 %v893, %v895
      %v897 = vrot.slane %v869, %v896
      %v898 = vcombine.high %v876, %v876
      %v899 = vcombine.high %v883, %v883
      %v900 = vcombine.high %v890, %v890
      %v901 = vcombine.high %v897, %v897
      %v902 = vlaneseq
      %v903 = vshrl.u32 %v902, 7
      %v904 = vsub.s32 0, %v903
      %v905 = vrot.slane %v827, %v904
      %v906 = vlaneseq
      %v907 = vshrl.u32 %v906, 7
      %v908 = vsub.s32 0, %v907
      %v909 = vrot.slane %v841, %v908
      %v910 = vlaneseq
      %v911 = vshrl.u32 %v910, 7
      %v912 = vsub.s32 0, %v911
      %v913 = vrot.slane %v849, %v912
      %v914 = vlaneseq
      %v915 = vshrl.u32 %v914, 7
      %v916 = vsub.s32 0, %v915
      %v917 = vrot.slane %v851, %v916
      %v918 = vlaneseq
      %v919 = vshrl.u32 %v918, 7
      %v920 = vsub.s32 0, %v919
      %v921 = vrot.slane %v834, %v920
      %v922 = vlaneseq
      %v923 = vshrl.u32 %v922, 7
      %v924 = vsub.s32 0, %v923
      %v925 = vrot.slane %v848, %v924
      %v926 = vlaneseq
      %v927 = vshrl.u32 %v926, 7
      %v928 = vsub.s32 0, %v927
      %v929 = vrot.slane %v850, %v928
      %v930 = vlaneseq
      %v931 = vshrl.u32 %v930, 7
      %v932 = vsub.s32 0, %v931
      %v933 = vrot.slane %v852, %v932
      %v934 = vlaneseq
      %v935 = vshrl.u32 %v934, 7
      %v936 = vsub.s32 0, %v935
      %v937 = vrot.slane %v876, %v936
      %v938 = vlaneseq
      %v939 = vshrl.u32 %v938, 7
      %v940 = vsub.s32 0, %v939
      %v941 = vrot.slane %v890, %v940
      %v942 = vlaneseq
      %v943 = vshrl.u32 %v942, 7
      %v944 = vsub.s32 0, %v943
      %v945 = vrot.slane %v898, %v944
      %v946 = vlaneseq
      %v947 = vshrl.u32 %v946, 7
      %v948 = vsub.s32 0, %v947
      %v949 = vrot.slane %v900, %v948
      %v950 = vlaneseq
      %v951 = vshrl.u32 %v950, 7
      %v952 = vsub.s32 0, %v951
      %v953 = vrot.slane %v883, %v952
      %v954 = vlaneseq
      %v955 = vshrl.u32 %v954, 7
      %v956 = vsub.s32 0, %v955
      %v957 = vrot.slane %v897, %v956
      %v958 = vlaneseq
      %v959 = vshrl.u32 %v958, 7
      %v960 = vsub.s32 0, %v959
      %v961 = vrot.slane %v899, %v960
      %v962 = vlaneseq
      %v963 = vshrl.u32 %v962, 7
      %v964 = vsub.s32 0, %v963
      %v965 = vrot.slane %v901, %v964
      %v982 = vmul.f32 %v786, %v905
      %v983 = vmul.f32 %v787, %v909
      %v984 = vmul.f32 %v788, %v913
      %v985 = vmul.f32 %v789, %v917
      %v986 = vmul.f32 %v790, %v921
      %v987 = vmul.f32 %v791, %v925
      %v988 = vmul.f32 %v792, %v929
      %v989 = vmul.f32 %v793, %v933
      %v990 = vmul.f32 %v794, %v937
      %v991 = vmul.f32 %v795, %v941
      %v992 = vmul.f32 %v796, %v945
      %v993 = vmul.f32 %v797, %v949
      %v994 = vmul.f32 %v798, %v953
      %v995 = vmul.f32 %v799, %v957
      %v996 = vmul.f32 %v800, %v961
      %v997 = vmul.f32 %v801, %v965
      %998 = vadd.xlane.f32.xlu0 %v982
      %v999 = vpop.xlane.xlu0 %998
      %1000 = vadd.xlane.f32.xlu0 %v983
      %v1001 = vpop.xlane.xlu0 %1000
      %1002 = vadd.xlane.f32.xlu0 %v984
      %v1003 = vpop.xlane.xlu0 %1002
      %1004 = vadd.xlane.f32.xlu0 %v985
      %v1005 = vpop.xlane.xlu0 %1004
      %1006 = vadd.xlane.f32.xlu0 %v986
      %v1007 = vpop.xlane.xlu0 %1006
      %1008 = vadd.xlane.f32.xlu0 %v987
      %v1009 = vpop.xlane.xlu0 %1008
      %1010 = vadd.xlane.f32.xlu0 %v988
      %v1011 = vpop.xlane.xlu0 %1010
      %1012 = vadd.xlane.f32.xlu0 %v989
      %v1013 = vpop.xlane.xlu0 %1012
      %1014 = vadd.xlane.f32.xlu0 %v990
      %v1015 = vpop.xlane.xlu0 %1014
      %1016 = vadd.xlane.f32.xlu0 %v991
      %v1017 = vpop.xlane.xlu0 %1016
      %1018 = vadd.xlane.f32.xlu0 %v992
      %v1019 = vpop.xlane.xlu0 %1018
      %1020 = vadd.xlane.f32.xlu0 %v993
      %v1021 = vpop.xlane.xlu0 %1020
      %1022 = vadd.xlane.f32.xlu0 %v994
      %v1023 = vpop.xlane.xlu0 %1022
      %1024 = vadd.xlane.f32.xlu0 %v995
      %v1025 = vpop.xlane.xlu0 %1024
      %1026 = vadd.xlane.f32.xlu0 %v996
      %v1027 = vpop.xlane.xlu0 %1026
      %1028 = vadd.xlane.f32.xlu0 %v997
      %v1029 = vpop.xlane.xlu0 %1028
      %v1046 = vlaneseq
      %v1047 = vand.u32 %v1046, 127
      %v1048 = vlaneseq
      %v1049 = vshrl.u32 %v1048, 7
      %v1050 = vsub.s32 %v1047, %v1049
      %v1051 = vrot.slane %v999, %v1050
      %v1052 = vlaneseq
      %v1053 = vshrl.u32 %v1052, 7
      %v1054 = vsub.s32 %v1047, %v1053
      %v1055 = vrot.slane %v1001, %v1054
      %v1056 = vlaneseq
      %v1057 = vshrl.u32 %v1056, 7
      %v1058 = vsub.s32 %v1047, %v1057
      %v1059 = vrot.slane %v1003, %v1058
      %v1060 = vlaneseq
      %v1061 = vshrl.u32 %v1060, 7
      %v1062 = vsub.s32 %v1047, %v1061
      %v1063 = vrot.slane %v1005, %v1062
      %v1064 = vlaneseq
      %v1065 = vshrl.u32 %v1064, 7
      %v1066 = vsub.s32 %v1047, %v1065
      %v1067 = vrot.slane %v1007, %v1066
      %v1068 = vlaneseq
      %v1069 = vshrl.u32 %v1068, 7
      %v1070 = vsub.s32 %v1047, %v1069
      %v1071 = vrot.slane %v1009, %v1070
      %v1072 = vlaneseq
      %v1073 = vshrl.u32 %v1072, 7
      %v1074 = vsub.s32 %v1047, %v1073
      %v1075 = vrot.slane %v1011, %v1074
      %v1076 = vlaneseq
      %v1077 = vshrl.u32 %v1076, 7
      %v1078 = vsub.s32 %v1047, %v1077
      %v1079 = vrot.slane %v1013, %v1078
      %v1080 = vlaneseq
      %v1081 = vshrl.u32 %v1080, 7
      %v1082 = vsub.s32 %v1047, %v1081
      %v1083 = vrot.slane %v1015, %v1082
      %v1084 = vlaneseq
      %v1085 = vshrl.u32 %v1084, 7
      %v1086 = vsub.s32 %v1047, %v1085
      %v1087 = vrot.slane %v1017, %v1086
      %v1088 = vlaneseq
      %v1089 = vshrl.u32 %v1088, 7
      %v1090 = vsub.s32 %v1047, %v1089
      %v1091 = vrot.slane %v1019, %v1090
      %v1092 = vlaneseq
      %v1093 = vshrl.u32 %v1092, 7
      %v1094 = vsub.s32 %v1047, %v1093
      %v1095 = vrot.slane %v1021, %v1094
      %v1096 = vlaneseq
      %v1097 = vshrl.u32 %v1096, 7
      %v1098 = vsub.s32 %v1047, %v1097
      %v1099 = vrot.slane %v1023, %v1098
      %v1100 = vlaneseq
      %v1101 = vshrl.u32 %v1100, 7
      %v1102 = vsub.s32 %v1047, %v1101
      %v1103 = vrot.slane %v1025, %v1102
      %v1104 = vlaneseq
      %v1105 = vshrl.u32 %v1104, 7
      %v1106 = vsub.s32 %v1047, %v1105
      %v1107 = vrot.slane %v1027, %v1106
      %v1108 = vlaneseq
      %v1109 = vshrl.u32 %v1108, 7
      %v1110 = vsub.s32 %v1047, %v1109
      %v1111 = vrot.slane %v1029, %v1110
      %vm1112 = vcmask 1041409
      %v1113 = vsel %vm1112, %v1055, %v1051
      %vm1114 = vcmask 1042434
      %v1115 = vsel %vm1114, %v1059, %v1113
      %vm1116 = vcmask 1043459
      %v1117 = vsel %vm1116, %v1063, %v1115
      %vm1118 = vcmask 1044484
      %v1119 = vsel %vm1118, %v1067, %v1117
      %vm1120 = vcmask 1045509
      %v1121 = vsel %vm1120, %v1071, %v1119
      %vm1122 = vcmask 1046534
      %v1123 = vsel %vm1122, %v1075, %v1121
      %vm1124 = vcmask 1047559
      %v1125 = vsel %vm1124, %v1079, %v1123
      %v1126 = vsel %vm1112, %v1087, %v1083
      %v1127 = vsel %vm1114, %v1091, %v1126
      %v1128 = vsel %vm1116, %v1095, %v1127
      %v1129 = vsel %vm1118, %v1099, %v1128
      %v1130 = vsel %vm1120, %v1103, %v1129
      %v1131 = vsel %vm1122, %v1107, %v1130
      %v1132 = vsel %vm1124, %v1111, %v1131
      %vm1135 = vcmask 64512
      %v1136 = vsel %vm1135, %v1125, -inf
      %1137 = vmax.xlane.f32.xlu0 %v1136
      %v1138 = vpop.xlane.xlu0 %1137
      %v1139 = vsel %vm1135, %v1132, -inf
      %1140 = vmax.xlane.f32.xlu0 %v1139
      %v1141 = vpop.xlane.xlu0 %1140
      %v1144 = vlaneseq
      %v1145 = vshrl.u32 %v1144, 7
      %v1146 = vsub.s32 0, %v1145
      %v1147 = vrot.slane %v1138, %v1146
      %v1148 = vlaneseq
      %v1149 = vshrl.u32 %v1148, 7
      %v1150 = vsub.s32 1, %v1149
      %v1151 = vrot.slane %v1138, %v1150
      %v1152 = vlaneseq
      %v1153 = vshrl.u32 %v1152, 7
      %v1154 = vsub.s32 2, %v1153
      %v1155 = vrot.slane %v1138, %v1154
      %v1156 = vlaneseq
      %v1157 = vshrl.u32 %v1156, 7
      %v1158 = vsub.s32 3, %v1157
      %v1159 = vrot.slane %v1138, %v1158
      %v1160 = vlaneseq
      %v1161 = vshrl.u32 %v1160, 7
      %v1162 = vsub.s32 4, %v1161
      %v1163 = vrot.slane %v1138, %v1162
      %v1164 = vlaneseq
      %v1165 = vshrl.u32 %v1164, 7
      %v1166 = vsub.s32 5, %v1165
      %v1167 = vrot.slane %v1138, %v1166
      %v1168 = vlaneseq
      %v1169 = vshrl.u32 %v1168, 7
      %v1170 = vsub.s32 6, %v1169
      %v1171 = vrot.slane %v1138, %v1170
      %v1172 = vlaneseq
      %v1173 = vshrl.u32 %v1172, 7
      %v1174 = vsub.s32 7, %v1173
      %v1175 = vrot.slane %v1138, %v1174
      %v1176 = vlaneseq
      %v1177 = vshrl.u32 %v1176, 7
      %v1178 = vsub.s32 0, %v1177
      %v1179 = vrot.slane %v1141, %v1178
      %v1180 = vlaneseq
      %v1181 = vshrl.u32 %v1180, 7
      %v1182 = vsub.s32 1, %v1181
      %v1183 = vrot.slane %v1141, %v1182
      %v1184 = vlaneseq
      %v1185 = vshrl.u32 %v1184, 7
      %v1186 = vsub.s32 2, %v1185
      %v1187 = vrot.slane %v1141, %v1186
      %v1188 = vlaneseq
      %v1189 = vshrl.u32 %v1188, 7
      %v1190 = vsub.s32 3, %v1189
      %v1191 = vrot.slane %v1141, %v1190
      %v1192 = vlaneseq
      %v1193 = vshrl.u32 %v1192, 7
      %v1194 = vsub.s32 4, %v1193
      %v1195 = vrot.slane %v1141, %v1194
      %v1196 = vlaneseq
      %v1197 = vshrl.u32 %v1196, 7
      %v1198 = vsub.s32 5, %v1197
      %v1199 = vrot.slane %v1141, %v1198
      %v1200 = vlaneseq
      %v1201 = vshrl.u32 %v1200, 7
      %v1202 = vsub.s32 6, %v1201
      %v1203 = vrot.slane %v1141, %v1202
      %v1204 = vlaneseq
      %v1205 = vshrl.u32 %v1204, 7
      %v1206 = vsub.s32 7, %v1205
      %v1207 = vrot.slane %v1141, %v1206
      %v1224 = vsub.f32 %v999, %v1147
      %v1225 = vsub.f32 %v1001, %v1151
      %v1226 = vsub.f32 %v1003, %v1155
      %v1227 = vsub.f32 %v1005, %v1159
      %v1228 = vsub.f32 %v1007, %v1163
      %v1229 = vsub.f32 %v1009, %v1167
      %v1230 = vsub.f32 %v1011, %v1171
      %v1231 = vsub.f32 %v1013, %v1175
      %v1232 = vsub.f32 %v1015, %v1179
      %v1233 = vsub.f32 %v1017, %v1183
      %v1234 = vsub.f32 %v1019, %v1187
      %v1235 = vsub.f32 %v1021, %v1191
      %v1236 = vsub.f32 %v1023, %v1195
      %v1237 = vsub.f32 %v1025, %v1199
      %v1238 = vsub.f32 %v1027, %v1203
      %v1239 = vsub.f32 %v1029, %v1207
      %v1240 = vmul.f32 %v1224, 1.442695
      %v1241 = vpow.pop %v1240
      %v1242 = vmul.f32 %v1225, 1.442695
      %v1243 = vpow.pop %v1242
      %v1244 = vmul.f32 %v1226, 1.442695
      %v1245 = vpow.pop %v1244
      %v1246 = vmul.f32 %v1227, 1.442695
      %v1247 = vpow.pop %v1246
      %v1248 = vmul.f32 %v1228, 1.442695
      %v1249 = vpow.pop %v1248
      %v1250 = vmul.f32 %v1229, 1.442695
      %v1251 = vpow.pop %v1250
      %v1252 = vmul.f32 %v1230, 1.442695
      %v1253 = vpow.pop %v1252
      %v1254 = vmul.f32 %v1231, 1.442695
      %v1255 = vpow.pop %v1254
      %v1256 = vmul.f32 %v1232, 1.442695
      %v1257 = vpow.pop %v1256
      %v1258 = vmul.f32 %v1233, 1.442695
      %v1259 = vpow.pop %v1258
      %v1260 = vmul.f32 %v1234, 1.442695
      %v1261 = vpow.pop %v1260
      %v1262 = vmul.f32 %v1235, 1.442695
      %v1263 = vpow.pop %v1262
      %v1264 = vmul.f32 %v1236, 1.442695
      %v1265 = vpow.pop %v1264
      %v1266 = vmul.f32 %v1237, 1.442695
      %v1267 = vpow.pop %v1266
      %v1268 = vmul.f32 %v1238, 1.442695
      %v1269 = vpow.pop %v1268
      %v1270 = vmul.f32 %v1239, 1.442695
      %v1271 = vpow.pop %v1270
      %1288 = vset.pattern.permute.xlu0 0
      %1289 = vperm.xlu0 %1288, %v1241
      %v1290 = vpop.permute.xlu0 %1289
      %1291 = vset.pattern.permute.xlu0 0
      %1292 = vperm.xlu0 %1291, %v1243
      %v1293 = vpop.permute.xlu0 %1292
      %1294 = vset.pattern.permute.xlu0 0
      %1295 = vperm.xlu0 %1294, %v1245
      %v1296 = vpop.permute.xlu0 %1295
      %1297 = vset.pattern.permute.xlu0 0
      %1298 = vperm.xlu0 %1297, %v1247
      %v1299 = vpop.permute.xlu0 %1298
      %1300 = vset.pattern.permute.xlu0 0
      %1301 = vperm.xlu0 %1300, %v1249
      %v1302 = vpop.permute.xlu0 %1301
      %1303 = vset.pattern.permute.xlu0 0
      %1304 = vperm.xlu0 %1303, %v1251
      %v1305 = vpop.permute.xlu0 %1304
      %1306 = vset.pattern.permute.xlu0 0
      %1307 = vperm.xlu0 %1306, %v1253
      %v1308 = vpop.permute.xlu0 %1307
      %1309 = vset.pattern.permute.xlu0 0
      %1310 = vperm.xlu0 %1309, %v1255
      %v1311 = vpop.permute.xlu0 %1310
      %1312 = vset.pattern.permute.xlu0 0
      %1313 = vperm.xlu0 %1312, %v1257
      %v1314 = vpop.permute.xlu0 %1313
      %1315 = vset.pattern.permute.xlu0 0
      %1316 = vperm.xlu0 %1315, %v1259
      %v1317 = vpop.permute.xlu0 %1316
      %1318 = vset.pattern.permute.xlu0 0
      %1319 = vperm.xlu0 %1318, %v1261
      %v1320 = vpop.permute.xlu0 %1319
      %1321 = vset.pattern.permute.xlu0 0
      %1322 = vperm.xlu0 %1321, %v1263
      %v1323 = vpop.permute.xlu0 %1322
      %1324 = vset.pattern.permute.xlu0 0
      %1325 = vperm.xlu0 %1324, %v1265
      %v1326 = vpop.permute.xlu0 %1325
      %1327 = vset.pattern.permute.xlu0 0
      %1328 = vperm.xlu0 %1327, %v1267
      %v1329 = vpop.permute.xlu0 %1328
      %1330 = vset.pattern.permute.xlu0 0
      %1331 = vperm.xlu0 %1330, %v1269
      %v1332 = vpop.permute.xlu0 %1331
      %1333 = vset.pattern.permute.xlu0 0
      %1334 = vperm.xlu0 %1333, %v1271
      %v1335 = vpop.permute.xlu0 %1334
      %v1336 = vlaneseq
      %v1337 = vshrl.u32 %v1336, 7
      %v1338 = vsub.s32 %v1047, %v1337
      %v1339 = vrot.slane %v1290, %v1338
      %v1340 = vlaneseq
      %v1341 = vshrl.u32 %v1340, 7
      %v1342 = vsub.s32 %v1047, %v1341
      %v1343 = vrot.slane %v1293, %v1342
      %v1344 = vlaneseq
      %v1345 = vshrl.u32 %v1344, 7
      %v1346 = vsub.s32 %v1047, %v1345
      %v1347 = vrot.slane %v1296, %v1346
      %v1348 = vlaneseq
      %v1349 = vshrl.u32 %v1348, 7
      %v1350 = vsub.s32 %v1047, %v1349
      %v1351 = vrot.slane %v1299, %v1350
      %v1352 = vlaneseq
      %v1353 = vshrl.u32 %v1352, 7
      %v1354 = vsub.s32 %v1047, %v1353
      %v1355 = vrot.slane %v1302, %v1354
      %v1356 = vlaneseq
      %v1357 = vshrl.u32 %v1356, 7
      %v1358 = vsub.s32 %v1047, %v1357
      %v1359 = vrot.slane %v1305, %v1358
      %v1360 = vlaneseq
      %v1361 = vshrl.u32 %v1360, 7
      %v1362 = vsub.s32 %v1047, %v1361
      %v1363 = vrot.slane %v1308, %v1362
      %v1364 = vlaneseq
      %v1365 = vshrl.u32 %v1364, 7
      %v1366 = vsub.s32 %v1047, %v1365
      %v1367 = vrot.slane %v1311, %v1366
      %v1368 = vlaneseq
      %v1369 = vshrl.u32 %v1368, 7
      %v1370 = vsub.s32 %v1047, %v1369
      %v1371 = vrot.slane %v1314, %v1370
      %v1372 = vlaneseq
      %v1373 = vshrl.u32 %v1372, 7
      %v1374 = vsub.s32 %v1047, %v1373
      %v1375 = vrot.slane %v1317, %v1374
      %v1376 = vlaneseq
      %v1377 = vshrl.u32 %v1376, 7
      %v1378 = vsub.s32 %v1047, %v1377
      %v1379 = vrot.slane %v1320, %v1378
      %v1380 = vlaneseq
      %v1381 = vshrl.u32 %v1380, 7
      %v1382 = vsub.s32 %v1047, %v1381
      %v1383 = vrot.slane %v1323, %v1382
      %v1384 = vlaneseq
      %v1385 = vshrl.u32 %v1384, 7
      %v1386 = vsub.s32 %v1047, %v1385
      %v1387 = vrot.slane %v1326, %v1386
      %v1388 = vlaneseq
      %v1389 = vshrl.u32 %v1388, 7
      %v1390 = vsub.s32 %v1047, %v1389
      %v1391 = vrot.slane %v1329, %v1390
      %v1392 = vlaneseq
      %v1393 = vshrl.u32 %v1392, 7
      %v1394 = vsub.s32 %v1047, %v1393
      %v1395 = vrot.slane %v1332, %v1394
      %v1396 = vlaneseq
      %v1397 = vshrl.u32 %v1396, 7
      %v1398 = vsub.s32 %v1047, %v1397
      %v1399 = vrot.slane %v1335, %v1398
      %v1400 = vsel %vm1112, %v1343, %v1339
      %v1401 = vsel %vm1114, %v1347, %v1400
      %v1402 = vsel %vm1116, %v1351, %v1401
      %v1403 = vsel %vm1118, %v1355, %v1402
      %v1404 = vsel %vm1120, %v1359, %v1403
      %v1405 = vsel %vm1122, %v1363, %v1404
      %v1406 = vsel %vm1124, %v1367, %v1405
      %v1407 = vsel %vm1112, %v1375, %v1371
      %v1408 = vsel %vm1114, %v1379, %v1407
      %v1409 = vsel %vm1116, %v1383, %v1408
      %v1410 = vsel %vm1118, %v1387, %v1409
      %v1411 = vsel %vm1120, %v1391, %v1410
      %v1412 = vsel %vm1122, %v1395, %v1411
      %v1413 = vsel %vm1124, %v1399, %v1412
      %v1416 = vsel %vm1135, %v1406, 0.0
      %1417 = vadd.xlane.f32.xlu0 %v1416
      %v1418 = vpop.xlane.xlu0 %1417
      %v1419 = vsel %vm1135, %v1413, 0.0
      %1420 = vadd.xlane.f32.xlu0 %v1419
      %v1421 = vpop.xlane.xlu0 %1420
      %v1422 = vrcp.pop %v1418
      %v1423 = vrcp.pop %v1421
      %v1426 = vlaneseq
      %v1427 = vshrl.u32 %v1426, 7
      %v1428 = vsub.s32 0, %v1427
      %v1429 = vrot.slane %v1422, %v1428
      %v1430 = vlaneseq
      %v1431 = vshrl.u32 %v1430, 7
      %v1432 = vsub.s32 1, %v1431
      %v1433 = vrot.slane %v1422, %v1432
      %v1434 = vlaneseq
      %v1435 = vshrl.u32 %v1434, 7
      %v1436 = vsub.s32 2, %v1435
      %v1437 = vrot.slane %v1422, %v1436
      %v1438 = vlaneseq
      %v1439 = vshrl.u32 %v1438, 7
      %v1440 = vsub.s32 3, %v1439
      %v1441 = vrot.slane %v1422, %v1440
      %v1442 = vlaneseq
      %v1443 = vshrl.u32 %v1442, 7
      %v1444 = vsub.s32 4, %v1443
      %v1445 = vrot.slane %v1422, %v1444
      %v1446 = vlaneseq
      %v1447 = vshrl.u32 %v1446, 7
      %v1448 = vsub.s32 5, %v1447
      %v1449 = vrot.slane %v1422, %v1448
      %v1450 = vlaneseq
      %v1451 = vshrl.u32 %v1450, 7
      %v1452 = vsub.s32 6, %v1451
      %v1453 = vrot.slane %v1422, %v1452
      %v1454 = vlaneseq
      %v1455 = vshrl.u32 %v1454, 7
      %v1456 = vsub.s32 7, %v1455
      %v1457 = vrot.slane %v1422, %v1456
      %v1458 = vlaneseq
      %v1459 = vshrl.u32 %v1458, 7
      %v1460 = vsub.s32 0, %v1459
      %v1461 = vrot.slane %v1423, %v1460
      %v1462 = vlaneseq
      %v1463 = vshrl.u32 %v1462, 7
      %v1464 = vsub.s32 1, %v1463
      %v1465 = vrot.slane %v1423, %v1464
      %v1466 = vlaneseq
      %v1467 = vshrl.u32 %v1466, 7
      %v1468 = vsub.s32 2, %v1467
      %v1469 = vrot.slane %v1423, %v1468
      %v1470 = vlaneseq
      %v1471 = vshrl.u32 %v1470, 7
      %v1472 = vsub.s32 3, %v1471
      %v1473 = vrot.slane %v1423, %v1472
      %v1474 = vlaneseq
      %v1475 = vshrl.u32 %v1474, 7
      %v1476 = vsub.s32 4, %v1475
      %v1477 = vrot.slane %v1423, %v1476
      %v1478 = vlaneseq
      %v1479 = vshrl.u32 %v1478, 7
      %v1480 = vsub.s32 5, %v1479
      %v1481 = vrot.slane %v1423, %v1480
      %v1482 = vlaneseq
      %v1483 = vshrl.u32 %v1482, 7
      %v1484 = vsub.s32 6, %v1483
      %v1485 = vrot.slane %v1423, %v1484
      %v1486 = vlaneseq
      %v1487 = vshrl.u32 %v1486, 7
      %v1488 = vsub.s32 7, %v1487
      %v1489 = vrot.slane %v1423, %v1488
      %v1506 = vmul.f32 %v1241, %v1429
      %v1507 = vmul.f32 %v1243, %v1433
      %v1508 = vmul.f32 %v1245, %v1437
      %v1509 = vmul.f32 %v1247, %v1441
      %v1510 = vmul.f32 %v1249, %v1445
      %v1511 = vmul.f32 %v1251, %v1449
      %v1512 = vmul.f32 %v1253, %v1453
      %v1513 = vmul.f32 %v1255, %v1457
      %v1514 = vmul.f32 %v1257, %v1461
      %v1515 = vmul.f32 %v1259, %v1465
      %v1516 = vmul.f32 %v1261, %v1469
      %v1517 = vmul.f32 %v1263, %v1473
      %v1518 = vmul.f32 %v1265, %v1477
      %v1519 = vmul.f32 %v1267, %v1481
      %v1520 = vmul.f32 %v1269, %v1485
      %v1521 = vmul.f32 %v1271, %v1489
      %1523 = vset.pattern.permute.xlu0 0
      %1524 = vperm.xlu0 %1523, %v1506
      %v1525 = vpop.permute.xlu0 %1524
      %1528 = vset.pattern.permute.xlu0 0
      %1529 = vperm.xlu0 %1528, %v1507
      %v1530 = vpop.permute.xlu0 %1529
      %1533 = vset.pattern.permute.xlu0 0
      %1534 = vperm.xlu0 %1533, %v1508
      %v1535 = vpop.permute.xlu0 %1534
      %1538 = vset.pattern.permute.xlu0 0
      %1539 = vperm.xlu0 %1538, %v1509
      %v1540 = vpop.permute.xlu0 %1539
      %1543 = vset.pattern.permute.xlu0 0
      %1544 = vperm.xlu0 %1543, %v1510
      %v1545 = vpop.permute.xlu0 %1544
      %1548 = vset.pattern.permute.xlu0 0
      %1549 = vperm.xlu0 %1548, %v1511
      %v1550 = vpop.permute.xlu0 %1549
      %1553 = vset.pattern.permute.xlu0 0
      %1554 = vperm.xlu0 %1553, %v1512
      %v1555 = vpop.permute.xlu0 %1554
      %1558 = vset.pattern.permute.xlu0 0
      %1559 = vperm.xlu0 %1558, %v1513
      %v1560 = vpop.permute.xlu0 %1559
      %1563 = vset.pattern.permute.xlu0 0
      %1564 = vperm.xlu0 %1563, %v1514
      %v1565 = vpop.permute.xlu0 %1564
      %1568 = vset.pattern.permute.xlu0 0
      %1569 = vperm.xlu0 %1568, %v1515
      %v1570 = vpop.permute.xlu0 %1569
      %1573 = vset.pattern.permute.xlu0 0
      %1574 = vperm.xlu0 %1573, %v1516
      %v1575 = vpop.permute.xlu0 %1574
      %1578 = vset.pattern.permute.xlu0 0
      %1579 = vperm.xlu0 %1578, %v1517
      %v1580 = vpop.permute.xlu0 %1579
      %1583 = vset.pattern.permute.xlu0 0
      %1584 = vperm.xlu0 %1583, %v1518
      %v1585 = vpop.permute.xlu0 %1584
      %1588 = vset.pattern.permute.xlu0 0
      %1589 = vperm.xlu0 %1588, %v1519
      %v1590 = vpop.permute.xlu0 %1589
      %1593 = vset.pattern.permute.xlu0 0
      %1594 = vperm.xlu0 %1593, %v1520
      %v1595 = vpop.permute.xlu0 %1594
      %1598 = vset.pattern.permute.xlu0 0
      %1599 = vperm.xlu0 %1598, %v1521
      %v1600 = vpop.permute.xlu0 %1599
      %v1602 = vmul.f32 %v1525, %v786
      %v1603 = vmul.f32 %v1530, %v787
      %v1604 = vmul.f32 %v1535, %v788
      %v1605 = vmul.f32 %v1540, %v789
      %v1606 = vmul.f32 %v1545, %v790
      %v1607 = vmul.f32 %v1550, %v791
      %v1608 = vmul.f32 %v1555, %v792
      %v1609 = vmul.f32 %v1560, %v793
      %v1610 = vmul.f32 %v1565, %v794
      %v1611 = vmul.f32 %v1570, %v795
      %v1612 = vmul.f32 %v1575, %v796
      %v1613 = vmul.f32 %v1580, %v797
      %v1614 = vmul.f32 %v1585, %v798
      %v1615 = vmul.f32 %v1590, %v799
      %v1616 = vmul.f32 %v1595, %v800
      %v1617 = vmul.f32 %v1600, %v801
      %v1618 = vrot.slane %v1602, 4
      %v1619 = vadd.f32 %v1602, %v1618
      %v1620 = vrot.slane %v1619, 2
      %v1621 = vadd.f32 %v1619, %v1620
      %v1622 = vrot.slane %v1621, 1
      %v1623 = vadd.f32 %v1621, %v1622
      %v1624 = vrot.slane %v1603, 4
      %v1625 = vadd.f32 %v1603, %v1624
      %v1626 = vrot.slane %v1625, 2
      %v1627 = vadd.f32 %v1625, %v1626
      %v1628 = vrot.slane %v1627, 1
      %v1629 = vadd.f32 %v1627, %v1628
      %v1630 = vrot.slane %v1604, 4
      %v1631 = vadd.f32 %v1604, %v1630
      %v1632 = vrot.slane %v1631, 2
      %v1633 = vadd.f32 %v1631, %v1632
      %v1634 = vrot.slane %v1633, 1
      %v1635 = vadd.f32 %v1633, %v1634
      %v1636 = vrot.slane %v1605, 4
      %v1637 = vadd.f32 %v1605, %v1636
      %v1638 = vrot.slane %v1637, 2
      %v1639 = vadd.f32 %v1637, %v1638
      %v1640 = vrot.slane %v1639, 1
      %v1641 = vadd.f32 %v1639, %v1640
      %v1642 = vrot.slane %v1606, 4
      %v1643 = vadd.f32 %v1606, %v1642
      %v1644 = vrot.slane %v1643, 2
      %v1645 = vadd.f32 %v1643, %v1644
      %v1646 = vrot.slane %v1645, 1
      %v1647 = vadd.f32 %v1645, %v1646
      %v1648 = vrot.slane %v1607, 4
      %v1649 = vadd.f32 %v1607, %v1648
      %v1650 = vrot.slane %v1649, 2
      %v1651 = vadd.f32 %v1649, %v1650
      %v1652 = vrot.slane %v1651, 1
      %v1653 = vadd.f32 %v1651, %v1652
      %v1654 = vrot.slane %v1608, 4
      %v1655 = vadd.f32 %v1608, %v1654
      %v1656 = vrot.slane %v1655, 2
      %v1657 = vadd.f32 %v1655, %v1656
      %v1658 = vrot.slane %v1657, 1
      %v1659 = vadd.f32 %v1657, %v1658
      %v1660 = vrot.slane %v1609, 4
      %v1661 = vadd.f32 %v1609, %v1660
      %v1662 = vrot.slane %v1661, 2
      %v1663 = vadd.f32 %v1661, %v1662
      %v1664 = vrot.slane %v1663, 1
      %v1665 = vadd.f32 %v1663, %v1664
      %v1666 = vrot.slane %v1610, 4
      %v1667 = vadd.f32 %v1610, %v1666
      %v1668 = vrot.slane %v1667, 2
      %v1669 = vadd.f32 %v1667, %v1668
      %v1670 = vrot.slane %v1669, 1
      %v1671 = vadd.f32 %v1669, %v1670
      %v1672 = vrot.slane %v1611, 4
      %v1673 = vadd.f32 %v1611, %v1672
      %v1674 = vrot.slane %v1673, 2
      %v1675 = vadd.f32 %v1673, %v1674
      %v1676 = vrot.slane %v1675, 1
      %v1677 = vadd.f32 %v1675, %v1676
      %v1678 = vrot.slane %v1612, 4
      %v1679 = vadd.f32 %v1612, %v1678
      %v1680 = vrot.slane %v1679, 2
      %v1681 = vadd.f32 %v1679, %v1680
      %v1682 = vrot.slane %v1681, 1
      %v1683 = vadd.f32 %v1681, %v1682
      %v1684 = vrot.slane %v1613, 4
      %v1685 = vadd.f32 %v1613, %v1684
      %v1686 = vrot.slane %v1685, 2
      %v1687 = vadd.f32 %v1685, %v1686
      %v1688 = vrot.slane %v1687, 1
      %v1689 = vadd.f32 %v1687, %v1688
      %v1690 = vrot.slane %v1614, 4
      %v1691 = vadd.f32 %v1614, %v1690
      %v1692 = vrot.slane %v1691, 2
      %v1693 = vadd.f32 %v1691, %v1692
      %v1694 = vrot.slane %v1693, 1
      %v1695 = vadd.f32 %v1693, %v1694
      %v1696 = vrot.slane %v1615, 4
      %v1697 = vadd.f32 %v1615, %v1696
      %v1698 = vrot.slane %v1697, 2
      %v1699 = vadd.f32 %v1697, %v1698
      %v1700 = vrot.slane %v1699, 1
      %v1701 = vadd.f32 %v1699, %v1700
      %v1702 = vrot.slane %v1616, 4
      %v1703 = vadd.f32 %v1616, %v1702
      %v1704 = vrot.slane %v1703, 2
      %v1705 = vadd.f32 %v1703, %v1704
      %v1706 = vrot.slane %v1705, 1
      %v1707 = vadd.f32 %v1705, %v1706
      %v1708 = vrot.slane %v1617, 4
      %v1709 = vadd.f32 %v1617, %v1708
      %v1710 = vrot.slane %v1709, 2
      %v1711 = vadd.f32 %v1709, %v1710
      %v1712 = vrot.slane %v1711, 1
      %v1713 = vadd.f32 %v1711, %v1712
      %v1714 = vpack.c.bf16 %v781, %v780
      %v1715 = vld [vmem:[#allocation14] sm:$0xf]
      %v1716 = vld [vmem:[#allocation14 + $0x4] sm:$0xf]
      %v1717 = vld [vmem:[#allocation14 + $0x8] sm:$0xf]
      %v1718 = vld [vmem:[#allocation14 + $0xc] sm:$0xf]
      %v1719 = vld [vmem:[#allocation14 + $0x10] sm:$0xf]
      %v1720 = vld [vmem:[#allocation14 + $0x14] sm:$0xf]
      %v1721 = vld [vmem:[#allocation14 + $0x18] sm:$0xf]
      %v1722 = vld [vmem:[#allocation14 + $0x1c] sm:$0xf]
      %v1723 = vld [vmem:[#allocation14 + $0x20] sm:$0xf]
      %v1724 = vld [vmem:[#allocation14 + $0x24] sm:$0xf]
      %v1725 = vld [vmem:[#allocation14 + $0x28] sm:$0xf]
      %v1726 = vld [vmem:[#allocation14 + $0x2c] sm:$0xf]
      %v1727 = vld [vmem:[#allocation14 + $0x30] sm:$0xf]
      %v1728 = vld [vmem:[#allocation14 + $0x34] sm:$0xf]
      %v1729 = vld [vmem:[#allocation14 + $0x38] sm:$0xf]
      %v1730 = vld [vmem:[#allocation14 + $0x3c] sm:$0xf]
      %v1731 = vpack.c.bf16 %v1623, %v1623
      %v1732 = vpack.c.bf16 %v1629, %v1629
      %v1733 = vpack.c.bf16 %v1635, %v1635
      %v1734 = vpack.c.bf16 %v1641, %v1641
      %v1735 = vpack.c.bf16 %v1647, %v1647
      %v1736 = vpack.c.bf16 %v1653, %v1653
      %v1737 = vpack.c.bf16 %v1659, %v1659
      %v1738 = vpack.c.bf16 %v1665, %v1665
      %v1739 = vpack.c.bf16 %v1671, %v1671
      %v1740 = vpack.c.bf16 %v1677, %v1677
      %v1741 = vpack.c.bf16 %v1683, %v1683
      %v1742 = vpack.c.bf16 %v1689, %v1689
      %v1743 = vpack.c.bf16 %v1695, %v1695
      %v1744 = vpack.c.bf16 %v1701, %v1701
      %v1745 = vpack.c.bf16 %v1707, %v1707
      %v1746 = vpack.c.bf16 %v1713, %v1713
      %v1747 = vld [vmem:[#allocation14 + $0x40] sm:$0xf]
      %v1748 = vld [vmem:[#allocation14 + $0x44] sm:$0xf]
      %v1749 = vld [vmem:[#allocation14 + $0x48] sm:$0xf]
      %v1750 = vld [vmem:[#allocation14 + $0x4c] sm:$0xf]
      %v1751 = vld [vmem:[#allocation14 + $0x50] sm:$0xf]
      %v1752 = vld [vmem:[#allocation14 + $0x54] sm:$0xf]
      %v1753 = vld [vmem:[#allocation14 + $0x58] sm:$0xf]
      %v1754 = vld [vmem:[#allocation14 + $0x5c] sm:$0xf]
      %v1755 = vld [vmem:[#allocation14 + $0x60] sm:$0xf]
      %v1756 = vld [vmem:[#allocation14 + $0x64] sm:$0xf]
      %v1757 = vld [vmem:[#allocation14 + $0x68] sm:$0xf]
      %v1758 = vld [vmem:[#allocation14 + $0x6c] sm:$0xf]
      %v1759 = vld [vmem:[#allocation14 + $0x70] sm:$0xf]
      %v1760 = vld [vmem:[#allocation14 + $0x74] sm:$0xf]
      %v1761 = vld [vmem:[#allocation14 + $0x78] sm:$0xf]
      %v1762 = vld [vmem:[#allocation14 + $0x7c] sm:$0xf]
      %v1779 = vunpack.c.l.b16 %v1731
      %v1780 = vunpack.c.l.b16 %v1732
      %v1781 = vunpack.c.l.b16 %v1733
      %v1782 = vunpack.c.l.b16 %v1734
      %v1783 = vunpack.c.l.b16 %v1735
      %v1784 = vunpack.c.l.b16 %v1736
      %v1785 = vunpack.c.l.b16 %v1737
      %v1786 = vunpack.c.l.b16 %v1738
      %v1787 = vunpack.c.l.b16 %v1739
      %v1788 = vunpack.c.l.b16 %v1740
      %v1789 = vunpack.c.l.b16 %v1741
      %v1790 = vunpack.c.l.b16 %v1742
      %v1791 = vunpack.c.l.b16 %v1743
      %v1792 = vunpack.c.l.b16 %v1744
      %v1793 = vunpack.c.l.b16 %v1745
      %v1794 = vunpack.c.l.b16 %v1746
      %v1795 = vsel %vm1112, %v1780, %v1779
      %v1796 = vsel %vm1114, %v1781, %v1795
      %v1797 = vsel %vm1116, %v1782, %v1796
      %v1798 = vsel %vm1118, %v1783, %v1797
      %v1799 = vsel %vm1120, %v1784, %v1798
      %v1800 = vsel %vm1122, %v1785, %v1799
      %v1801 = vsel %vm1124, %v1786, %v1800
      %v1802 = vsel %vm1112, %v1788, %v1787
      %v1803 = vsel %vm1114, %v1789, %v1802
      %v1804 = vsel %vm1116, %v1790, %v1803
      %v1805 = vsel %vm1118, %v1791, %v1804
      %v1806 = vsel %vm1120, %v1792, %v1805
      %v1807 = vsel %vm1122, %v1793, %v1806
      %v1808 = vsel %vm1124, %v1794, %v1807
      %v1809 = vpack.c.b16 %v1808, %v1801
      %v1827 = vunpack.c.l.b16 %v1747
      %v1828 = vunpack.c.l.b16 %v1748
      %v1829 = vunpack.c.l.b16 %v1749
      %v1830 = vunpack.c.l.b16 %v1750
      %v1831 = vunpack.c.l.b16 %v1751
      %v1832 = vunpack.c.l.b16 %v1752
      %v1833 = vunpack.c.l.b16 %v1753
      %v1834 = vunpack.c.l.b16 %v1754
      %v1835 = vunpack.c.l.b16 %v1755
      %v1836 = vunpack.c.l.b16 %v1756
      %v1837 = vunpack.c.l.b16 %v1757
      %v1838 = vunpack.c.l.b16 %v1758
      %v1839 = vunpack.c.l.b16 %v1759
      %v1840 = vunpack.c.l.b16 %v1760
      %v1841 = vunpack.c.l.b16 %v1761
      %v1842 = vunpack.c.l.b16 %v1762
      %v1843 = vpack.c.b16 %v1828, %v1827
      %v1844 = vpack.c.b16 %v1830, %v1829
      %v1845 = vpack.c.b16 %v1832, %v1831
      %v1846 = vpack.c.b16 %v1834, %v1833
      %v1847 = vpack.c.b16 %v1836, %v1835
      %v1848 = vpack.c.b16 %v1838, %v1837
      %v1849 = vpack.c.b16 %v1840, %v1839
      %v1850 = vpack.c.b16 %v1842, %v1841
      %1859 = vmatprep.subr.bf16.mxu0 0
      %1860 = vmatpush1.bf16.msra.mxu0 %v1843
      %1861 = vmatprep.subr.bf16.mxu0 0
      %1862 = vmatpush1.bf16.msra.mxu0 %v1844
      %1863 = vmatprep.subr.bf16.mxu0 0
      %1864 = vmatpush1.bf16.msra.mxu0 %v1845
      %1865 = vmatprep.subr.bf16.mxu0 0
      %1866 = vmatpush1.bf16.msra.mxu0 %v1846
      %1867 = vmatprep.subr.bf16.mxu0 0
      %1868 = vmatpush1.bf16.msra.mxu0 %v1847
      %1869 = vmatprep.subr.bf16.mxu0 0
      %1870 = vmatpush1.bf16.msra.mxu0 %v1848
      %1871 = vmatprep.subr.bf16.mxu0 0
      %1872 = vmatpush1.bf16.msra.mxu0 %v1849
      %1873 = vmatprep.subr.bf16.mxu0 0
      %1874 = vmatpush1.bf16.msra.mxu0 %v1850
      %1875 = vmatprep.subr.bf16.mxu0 0
      %1876 = vmatpush1.bf16.msra.mxu0 0
      %1877 = vmatprep.subr.bf16.mxu0 0
      %1878 = vmatpush1.bf16.msra.mxu0 0
      %1879 = vmatprep.subr.bf16.mxu0 0
      %1880 = vmatpush1.bf16.msra.mxu0 0
      %1881 = vmatprep.subr.bf16.mxu0 0
      %1882 = vmatpush1.bf16.msra.mxu0 0
      %1883 = vmatprep.subr.bf16.mxu0 0
      %1884 = vmatpush1.bf16.msra.mxu0 0
      %1885 = vmatprep.subr.bf16.mxu0 0
      %1886 = vmatpush1.bf16.msra.mxu0 0
      %1887 = vmatprep.subr.bf16.mxu0 0
      %1888 = vmatpush1.bf16.msra.mxu0 0
      %1889 = vmatprep.subr.bf16.mxu0 0
      %1890 = vmatpush1.bf16.msra.mxu0 0
      %1891 = vmatprep.mubr.bf16.mxu0 0
      %1892 = vmatmul.mubr.bf16.gmra.mrb[0].mxu0 %v1809
      %v1893 = vpop.f32.mrb[0].mxu0
      %v1894 = vadd.f32 0.0, %v1893
      %v1895 = vpop.f32.mrb[0].mxu0
      %v1896 = vpop.f32.mrb[0].mxu0
      %v1897 = vadd.f32 0.0, %v1896
      %v1898 = vpop.f32.mrb[0].mxu0
      %1899 = vdwg.mxu0
      %v1916 = vunpack.c.l.b16 %v1715
      %v1917 = vunpack.c.l.b16 %v1716
      %v1918 = vunpack.c.l.b16 %v1717
      %v1919 = vunpack.c.l.b16 %v1718
      %v1920 = vunpack.c.l.b16 %v1719
      %v1921 = vunpack.c.l.b16 %v1720
      %v1922 = vunpack.c.l.b16 %v1721
      %v1923 = vunpack.c.l.b16 %v1722
      %v1924 = vunpack.c.l.b16 %v1723
      %v1925 = vunpack.c.l.b16 %v1724
      %v1926 = vunpack.c.l.b16 %v1725
      %v1927 = vunpack.c.l.b16 %v1726
      %v1928 = vunpack.c.l.b16 %v1727
      %v1929 = vunpack.c.l.b16 %v1728
      %v1930 = vunpack.c.l.b16 %v1729
      %v1931 = vunpack.c.l.b16 %v1730
      %v1932 = vpack.c.b16 %v1917, %v1916
      %v1933 = vpack.c.b16 %v1919, %v1918
      %v1934 = vpack.c.b16 %v1921, %v1920
      %v1935 = vpack.c.b16 %v1923, %v1922
      %v1936 = vpack.c.b16 %v1925, %v1924
      %v1937 = vpack.c.b16 %v1927, %v1926
      %v1938 = vpack.c.b16 %v1929, %v1928
      %v1939 = vpack.c.b16 %v1931, %v1930
      %1948 = vmatprep.subr.bf16.mxu0 0
      %1949 = vmatpush1.bf16.msra.mxu0 %v1932
      %1950 = vmatprep.subr.bf16.mxu0 0
      %1951 = vmatpush1.bf16.msra.mxu0 %v1933
      %1952 = vmatprep.subr.bf16.mxu0 0
      %1953 = vmatpush1.bf16.msra.mxu0 %v1934
      %1954 = vmatprep.subr.bf16.mxu0 0
      %1955 = vmatpush1.bf16.msra.mxu0 %v1935
      %1956 = vmatprep.subr.bf16.mxu0 0
      %1957 = vmatpush1.bf16.msra.mxu0 %v1936
      %1958 = vmatprep.subr.bf16.mxu0 0
      %1959 = vmatpush1.bf16.msra.mxu0 %v1937
      %1960 = vmatprep.subr.bf16.mxu0 0
      %1961 = vmatpush1.bf16.msra.mxu0 %v1938
      %1962 = vmatprep.subr.bf16.mxu0 0
      %1963 = vmatpush1.bf16.msra.mxu0 %v1939
      %1964 = vmatprep.subr.bf16.mxu0 0
      %1965 = vmatpush1.bf16.msra.mxu0 0
      %1966 = vmatprep.subr.bf16.mxu0 0
      %1967 = vmatpush1.bf16.msra.mxu0 0
      %1968 = vmatprep.subr.bf16.mxu0 0
      %1969 = vmatpush1.bf16.msra.mxu0 0
      %1970 = vmatprep.subr.bf16.mxu0 0
      %1971 = vmatpush1.bf16.msra.mxu0 0
      %1972 = vmatprep.subr.bf16.mxu0 0
      %1973 = vmatpush1.bf16.msra.mxu0 0
      %1974 = vmatprep.subr.bf16.mxu0 0
      %1975 = vmatpush1.bf16.msra.mxu0 0
      %1976 = vmatprep.subr.bf16.mxu0 0
      %1977 = vmatpush1.bf16.msra.mxu0 0
      %1978 = vmatprep.subr.bf16.mxu0 0
      %1979 = vmatpush1.bf16.msra.mxu0 0
      %1980 = vmatprep.mubr.bf16.mxu0 0
      %1981 = vmatmul.mubr.bf16.gmra.mrb[0].mxu0 %v1714
      %v1982 = vpop.f32.mrb[0].mxu0
      %v1983 = vadd.f32 %v1894, %v1982
      %v1984 = vpop.f32.mrb[0].mxu0
      %v1985 = vpop.f32.mrb[0].mxu0
      %v1986 = vadd.f32 %v1897, %v1985
      %v1987 = vpop.f32.mrb[0].mxu0
      %1988 = vdwg.mxu0
      %v1989 = vld [vmem:[%s7] sm:$0x1]
      %v1991 = vlaneseq
      %v1992 = vshrl.u32 %v1991, 7
      %v1993 = vsub.s32 0, %v1992
      %v1994 = vrot.slane %v1989, %v1993
      %v1996 = vadd.f32 %v1983, %v1994
      %v1997 = vadd.f32 %v1986, %v1994
      %v1998 = vtanh.pop %v1996
      %v1999 = vtanh.pop %v1997
      %v2000 = vpack.c.bf16 %v1999, %v1998
      %2001 = vst [vmem:[#allocation2] sm:$0xff] %v2000
      %vm2002 = vcmask 7168
      %2003 = vst.msk [vmem:[#allocation3] sm:$0xff] %vm2002, -inf
      %2004 = vst.msk [vmem:[#allocation3 + $0x8] sm:$0xff] %vm2002, -inf
      %2005 = vst.msk [vmem:[#allocation4] sm:$0xff] %vm2002, 0.0
      %2006 = vst.msk [vmem:[#allocation4 + $0x8] sm:$0xff] %vm2002, 0.0
    $region73: #{tpu_custom_call.1} parent=1 // pred_fallthru
      _
    %v2007 = vld [vmem:[#allocation2] sm:$0xff]
    %v2008 = vld [vmem:[#allocation16] sm:$0xf]
    %v2009 = vld [vmem:[#allocation16 + $0x4] sm:$0xf]
    %v2010 = vld [vmem:[#allocation16 + $0x8] sm:$0xf]
    %v2011 = vld [vmem:[#allocation16 + $0xc] sm:$0xf]
    %v2012 = vld [vmem:[#allocation16 + $0x10] sm:$0xf]
    %v2013 = vld [vmem:[#allocation16 + $0x14] sm:$0xf]
    %v2014 = vld [vmem:[#allocation16 + $0x18] sm:$0xf]
    %v2015 = vld [vmem:[#allocation16 + $0x1c] sm:$0xf]
    %v2016 = vld [vmem:[#allocation16 + $0x20] sm:$0xf]
    %v2017 = vld [vmem:[#allocation16 + $0x24] sm:$0xf]
    %v2018 = vld [vmem:[#allocation16 + $0x28] sm:$0xf]
    %v2019 = vld [vmem:[#allocation16 + $0x2c] sm:$0xf]
    %v2020 = vld [vmem:[#allocation16 + $0x30] sm:$0xf]
    %v2021 = vld [vmem:[#allocation16 + $0x34] sm:$0xf]
    %v2022 = vld [vmem:[#allocation16 + $0x38] sm:$0xf]
    %v2023 = vld [vmem:[#allocation16 + $0x3c] sm:$0xf]
    %v2024 = vld [vmem:[%s9] sm:$0x1]
    %v2026 = vlaneseq
    %v2027 = vshrl.u32 %v2026, 7
    %v2028 = vsub.s32 0, %v2027
    %v2029 = vrot.slane %v2024, %v2028
    %v2047 = vunpack.c.l.b16 %v2008
    %v2048 = vunpack.c.l.b16 %v2009
    %v2049 = vunpack.c.l.b16 %v2010
    %v2050 = vunpack.c.l.b16 %v2011
    %v2051 = vunpack.c.l.b16 %v2012
    %v2052 = vunpack.c.l.b16 %v2013
    %v2053 = vunpack.c.l.b16 %v2014
    %v2054 = vunpack.c.l.b16 %v2015
    %v2055 = vunpack.c.l.b16 %v2016
    %v2056 = vunpack.c.l.b16 %v2017
    %v2057 = vunpack.c.l.b16 %v2018
    %v2058 = vunpack.c.l.b16 %v2019
    %v2059 = vunpack.c.l.b16 %v2020
    %v2060 = vunpack.c.l.b16 %v2021
    %v2061 = vunpack.c.l.b16 %v2022
    %v2062 = vunpack.c.l.b16 %v2023
    %v2063 = vpack.c.b16 %v2048, %v2047
    %v2064 = vpack.c.b16 %v2050, %v2049
    %v2065 = vpack.c.b16 %v2052, %v2051
    %v2066 = vpack.c.b16 %v2054, %v2053
    %v2067 = vpack.c.b16 %v2056, %v2055
    %v2068 = vpack.c.b16 %v2058, %v2057
    %v2069 = vpack.c.b16 %v2060, %v2059
    %v2070 = vpack.c.b16 %v2062, %v2061
    %2079 = vmatprep.subr.bf16.mxu0 0
    %2080 = vmatpush1.bf16.msra.mxu0 %v2063
    %2081 = vmatprep.subr.bf16.mxu0 0
    %2082 = vmatpush1.bf16.msra.mxu0 %v2064
    %2083 = vmatprep.subr.bf16.mxu0 0
    %2084 = vmatpush1.bf16.msra.mxu0 %v2065
    %2085 = vmatprep.subr.bf16.mxu0 0
    %2086 = vmatpush1.bf16.msra.mxu0 %v2066
    %2087 = vmatprep.subr.bf16.mxu0 0
    %2088 = vmatpush1.bf16.msra.mxu0 %v2067
    %2089 = vmatprep.subr.bf16.mxu0 0
    %2090 = vmatpush1.bf16.msra.mxu0 %v2068
    %2091 = vmatprep.subr.bf16.mxu0 0
    %2092 = vmatpush1.bf16.msra.mxu0 %v2069
    %2093 = vmatprep.subr.bf16.mxu0 0
    %2094 = vmatpush1.bf16.msra.mxu0 %v2070
    %2095 = vmatprep.subr.bf16.mxu0 0
    %2096 = vmatpush1.bf16.msra.mxu0 0
    %2097 = vmatprep.subr.bf16.mxu0 0
    %2098 = vmatpush1.bf16.msra.mxu0 0
    %2099 = vmatprep.subr.bf16.mxu0 0
    %2100 = vmatpush1.bf16.msra.mxu0 0
    %2101 = vmatprep.subr.bf16.mxu0 0
    %2102 = vmatpush1.bf16.msra.mxu0 0
    %2103 = vmatprep.subr.bf16.mxu0 0
    %2104 = vmatpush1.bf16.msra.mxu0 0
    %2105 = vmatprep.subr.bf16.mxu0 0
    %2106 = vmatpush1.bf16.msra.mxu0 0
    %2107 = vmatprep.subr.bf16.mxu0 0
    %2108 = vmatpush1.bf16.msra.mxu0 0
    %2109 = vmatprep.subr.bf16.mxu0 0
    %2110 = vmatpush1.bf16.msra.mxu0 0
    %2111 = vmatprep.mubr.bf16.mxu0 0
    %2112 = vmatmul.mubr.bf16.gmra.mrb[0].mxu0 %v2007
    %v2113 = vpop.f32.mrb[0].mxu0
    %v2114 = vadd.f32 %v2029, %v2113
    %v2115 = vpop.f32.mrb[0].mxu0
    %v2116 = vpop.f32.mrb[0].mxu0
    %v2117 = vadd.f32 %v2029, %v2116
    %v2118 = vpop.f32.mrb[0].mxu0
    %2119 = vdwg.mxu0
    %s2120 = smul.u32 0, 128
    %s2121 = sshra.s32 %s2120, 7
    %s2122 = sand.u32 %s2120, 127
    %s2123 = scalar_lea.vmem [#allocation17], %s2121
    %2124 = vst [vmem:[%s2123] sm:$0xff] %v2114
    %2125 = vst [vmem:[%s2123 + $0x8] sm:$0xff] %v2117
    %v2126 = vld [vmem:[#allocation3] sm:$0xff]
    %v2127 = vld [vmem:[#allocation3 + $0x8] sm:$0xff]
    %2128 = vmax.xlane.f32.xlu0 %v2114
    %v2129 = vpop.xlane.xlu0 %2128
    %2130 = vmax.xlane.f32.xlu0 %v2117
    %v2131 = vpop.xlane.xlu0 %2130
    %v2132 = vmax.f32 %v2126, %v2129
    %v2133 = vmax.f32 %v2127, %v2131
    %v2134 = vld [vmem:[#allocation4] sm:$0xff]
    %v2135 = vld [vmem:[#allocation4 + $0x8] sm:$0xff]
    %v2136 = vsub.f32 %v2126, %v2132
    %v2137 = vsub.f32 %v2127, %v2133
    %v2138 = vmul.f32 %v2136, 1.442695
    %v2139 = vpow.pop %v2138
    %v2140 = vmul.f32 %v2137, 1.442695
    %v2141 = vpow.pop %v2140
    %v2142 = vmul.f32 %v2134, %v2139
    %v2143 = vmul.f32 %v2135, %v2141
    %2145 = vset.pattern.permute.xlu0 0
    %2146 = vperm.xlu0 %2145, %v2132
    %v2147 = vpop.permute.xlu0 %2146
    %2150 = vset.pattern.permute.xlu0 0
    %2151 = vperm.xlu0 %2150, %v2133
    %v2152 = vpop.permute.xlu0 %2151
    %v2154 = vsub.f32 %v2114, %v2147
    %v2155 = vsub.f32 %v2117, %v2152
    %v2156 = vmul.f32 %v2154, 1.442695
    %v2157 = vpow.pop %v2156
    %v2158 = vmul.f32 %v2155, 1.442695
    %v2159 = vpow.pop %v2158
    %2160 = vadd.xlane.f32.xlu0 %v2157
    %v2161 = vpop.xlane.xlu0 %2160
    %2162 = vadd.xlane.f32.xlu0 %v2159
    %v2163 = vpop.xlane.xlu0 %2162
    %v2164 = vadd.f32 %v2142, %v2161
    %v2165 = vadd.f32 %v2143, %v2163
    %vm2166 = vcmask 7168
    %2167 = vst.msk [vmem:[#allocation4] sm:$0xff] %vm2166, %v2164
    %2168 = vst.msk [vmem:[#allocation4 + $0x8] sm:$0xff] %vm2166, %v2165
    %2169 = vst.msk [vmem:[#allocation3] sm:$0xff] %vm2166, %v2132
    %2170 = vst.msk [vmem:[#allocation3 + $0x8] sm:$0xff] %vm2166, %v2133
    // Predicated region
    $region74: #{tpu_custom_call.1} parent=1 // pred_check
      %p2171 = pneg %p136
    $region75: #{tpu_custom_call.1} parent=1 // pred_check_branch
      %2173 = sbr.rel (%p2171) target = $region77
    $region76: #{tpu_custom_call.1} parent=1 // pred_region
      %v2174 = vld [vmem:[#allocation17] sm:$0xff]
      %v2175 = vld [vmem:[#allocation17 + $0x8] sm:$0xff]
      %v2176 = vld [vmem:[#allocation3] sm:$0xff]
      %v2177 = vld [vmem:[#allocation3 + $0x8] sm:$0xff]
      %v2178 = vld [vmem:[#allocation4] sm:$0xff]
      %v2179 = vld [vmem:[#allocation4 + $0x8] sm:$0xff]
      %v2180 = vlog2.pop %v2178
      %v2181 = vmul.f32 %v2180, 0.6931472
      %v2182 = vlog2.pop %v2179
      %v2183 = vmul.f32 %v2182, 0.6931472
      %v2184 = vadd.f32 %v2176, %v2181
      %v2185 = vadd.f32 %v2177, %v2183
      %2187 = vset.pattern.permute.xlu0 0
      %2188 = vperm.xlu0 %2187, %v2184
      %v2189 = vpop.permute.xlu0 %2188
      %2192 = vset.pattern.permute.xlu0 0
      %2193 = vperm.xlu0 %2192, %v2185
      %v2194 = vpop.permute.xlu0 %2193
      %v2196 = vsub.f32 %v2174, %v2189
      %v2197 = vsub.f32 %v2175, %v2194
      %2198 = vst [vmem:[#allocation17] sm:$0xff] %v2196
      %2199 = vst [vmem:[#allocation17 + $0x8] sm:$0xff] %v2197
    $region77: #{tpu_custom_call.1} parent=1 // pred_fallthru
      _
    // Predicated region
    $region78: #{tpu_custom_call.1} parent=1 // pred_check
      _
    $region79: #{tpu_custom_call.1} parent=1 // pred_check_branch
      %2201 = sbr.rel (0) target = $region81
    $region80: #{tpu_custom_call.1} parent=1 // pred_region
      %s2203 = ssub.s32 256, 256
      %2204 = vsyncadd [#allocation7], %s2203
      %s2205 = sshll.u32 [#allocation17], 4
      %s2206 = int_to_ptr.vmem [resolvable:$true] %s2205
      %2211 = dma.vmem_to_hbm [thread:$0]  %s2206, 256, %s10, [#allocation7], 128, 128, 8
    $region81: #{tpu_custom_call.1} parent=1 // pred_fallthru
      _
    // Predicated region
    $region82: #{tpu_custom_call.1} parent=1 // pred_check
      _
    $region83: #{tpu_custom_call.1} parent=1 // pred_check_branch
      %2213 = sbr.rel (0) target = $region85
    $region84: #{tpu_custom_call.1} parent=1 // pred_region
      %s2215 = ssub.s32 256, 256
      %2216 = vsyncadd [#allocation19], %s2215
      %s2217 = sshll.u32 [#allocation18], 4
      %s2218 = int_to_ptr.vmem [resolvable:$true] %s2217
      %2223 = dma.vmem_to_hbm [thread:$0]  %s2218, 256, %s11, [#allocation19], 128, 128, 8
    $region85: #{tpu_custom_call.1} parent=1 // pred_fallthru
      _
    // Predicated region
    $region86: #{tpu_custom_call.1} parent=1 // pred_check
      _
    $region87: #{tpu_custom_call.1} parent=1 // pred_check_branch
      %2225 = sbr.rel (0) target = $region89
    $region88: #{tpu_custom_call.1} parent=1 // pred_region
      %s2227 = ssub.s32 256, 256
      %2228 = vsyncadd [#allocation19], %s2227
      %s2229 = sshll.u32 [#allocation20], 4
      %s2230 = int_to_ptr.vmem [resolvable:$true] %s2229
      %2235 = dma.vmem_to_hbm [thread:$0]  %s2230, 256, %s12, [#allocation19], 128, 128, 8
    $region89: #{tpu_custom_call.1} parent=1 // pred_fallthru
      _
    // Predicated region
    $region90: #{tpu_custom_call.1} parent=1 // pred_check
      _
    $region91: #{tpu_custom_call.1} parent=1 // pred_check_branch
      %2237 = sbr.rel (0) target = $region93
    $region92: #{tpu_custom_call.1} parent=1 // pred_region
      %2238 = dma.done [#allocation7], 256
    $region93: #{tpu_custom_call.1} parent=1 // pred_fallthru
      _
    // Predicated region
    $region94: #{tpu_custom_call.1} parent=1 // pred_check
      _
    $region95: #{tpu_custom_call.1} parent=1 // pred_check_branch
      %2240 = sbr.rel (0) target = $region97
    $region96: #{tpu_custom_call.1} parent=1 // pred_region
      %2241 = dma.done [#allocation19], 256
    $region97: #{tpu_custom_call.1} parent=1 // pred_fallthru
      _
    // Predicated region
    $region98: #{tpu_custom_call.1} parent=1 // pred_check
      _
    $region99: #{tpu_custom_call.1} parent=1 // pred_check_branch
      %2243 = sbr.rel (0) target = $region101
    $region100: #{tpu_custom_call.1} parent=1 // pred_region
      %2244 = dma.done [#allocation19], 256
    $region101: #{tpu_custom_call.1} parent=1 // pred_fallthru
      _
    %2245 = vsyncpa [#allocation6], 1
    %2246 = vsyncpa [#allocation9], 1
    %2247 = vsyncpa [#allocation12], 1
    %2248 = vsyncpa [#allocation15], 1
    %2249 = vsyncpa [#allocation7], 1
    %2250 = vsyncpa [#allocation19], 1

</llo_original>
